<compile_context>
chip_gen: v7x
topology: tpu7x:2x2x1
jax: 0.10.0
libtpu: 0.0.40
codegen_flags: <defaults>
</compile_context>

<pallas_src>
import math

import jax
import jax.numpy as jnp
from jax.experimental import pallas as pl
from jax.experimental.pallas import tpu as pltpu

# ----------------------------- hyper-params ---------------------------------
B = 2          # batch (number of text prompts)
L = 8          # context length (seq)
D = 32         # transformer width
H = 4          # attention heads
DH = D // H    # head dim
LAYERS = 2     # transformer layers
VOCAB = 64     # vocab size
EMBED = 16     # text_projection output dim
EPS = 1e-5     # LayerNorm eps (PyTorch default)
BL = B * L     # fused batch*seq rows (matmul M dim)
DFC = 4 * D    # MLP hidden width == packed-vector lane width (128)

F32 = jnp.float32
BF16 = jnp.bfloat16


def _ln(x, g, b):
    """LayerNorm over the last dim (f32 math)."""
    mu = jnp.mean(x, axis=-1, keepdims=True)
    var = jnp.mean((x - mu) ** 2, axis=-1, keepdims=True)
    return (x - mu) * jax.lax.rsqrt(var + EPS) * g + b


# ------------------------- fused encoder kernel ------------------------------
def encoder_kernel(tok_ref, eot_ref, emb_ref, pos_ref, mask_ref,
                   wqkv_ref, wo_ref, wfc_ref, wproj_ref, vec_ref,
                   lnfg_ref, lnfb_ref, proj_ref,
                   out_ref,
                   x_ref):                                   # VMEM scratch (BL, D) f32
    layer = pl.program_id(0)

    # ---- grid step 0: token-embedding gather (one-hot @ MXU) + positional add
    @pl.when(layer == 0)
    def _():
        tok = tok_ref[...]                                   # (BL, 1) int32
        vocab_iota = jax.lax.broadcasted_iota(jnp.int32, (BL, VOCAB), 1)
        onehot = jnp.where(tok == vocab_iota, 1.0, 0.0).astype(BF16)
        x0 = jnp.dot(onehot, emb_ref[...], preferred_element_type=F32)  # (BL, D)
        x0 = x0.reshape(B, L, D) + pos_ref[...][None]        # broadcast pos over B
        x_ref[...] = x0.reshape(BL, D)

    # ---- unpack this layer's packed small vectors ((8, 128) lane-dense slab)
    vec = vec_ref[0]
    ln1g, ln1b, b_o = vec[0:1, :D], vec[1:2, :D], vec[2:3, :D]
    ln2g, ln2b, b_p = vec[3:4, :D], vec[4:5, :D], vec[5:6, :D]
    b_qkv = vec[6:7, :3 * D]
    b_fc = vec[7:8, :]

    x = x_ref[...]                                           # (BL, D) f32 resident

    # ---- LN1 + batched-head causal self-attention + residual ----
    h = _ln(x, ln1g, ln1b)
    qkv = jnp.dot(h.astype(BF16), wqkv_ref[0],
                  preferred_element_type=F32) + b_qkv        # (BL, 3D) f32

    # heads batched on a leading axis: (H, BL, DH) each
    q_h = jnp.stack([qkv[:, h * DH:(h + 1) * DH] for h in range(H)])
    k_h = jnp.stack([qkv[:, D + h * DH:D + (h + 1) * DH] for h in range(H)])
    v_h = jnp.stack([qkv[:, 2 * D + h * DH:2 * D + (h + 1) * DH] for h in range(H)])

    scale = 1.0 / math.sqrt(DH)
    s = jnp.einsum("hld,hmd->hlm", q_h.astype(BF16), k_h.astype(BF16),
                   preferred_element_type=F32) * scale       # (H, BL, BL) f32
    s = s + mask_ref[...][None]                              # block-diag causal mask
    s = s - jnp.max(s, axis=-1, keepdims=True)
    p = jnp.exp(s)
    p = p / jnp.sum(p, axis=-1, keepdims=True)               # exact divide (f32)
    o = jnp.einsum("hlm,hmd->hld", p.astype(BF16), v_h.astype(BF16),
                   preferred_element_type=F32)               # (H, BL, DH)

    o_cat = jnp.concatenate([o[h] for h in range(H)], axis=-1)   # (BL, D)
    attn = jnp.dot(o_cat.astype(BF16), wo_ref[0],
                   preferred_element_type=F32) + b_o         # single W_o matmul
    x = x + attn

    # ---- LN2 + MLP (c_fc -> QuickGELU -> c_proj) + residual ----
    h2 = _ln(x, ln2g, ln2b)
    m = jnp.dot(h2.astype(BF16), wfc_ref[0], preferred_element_type=F32) + b_fc
    m = m * jax.nn.sigmoid(1.702 * m)                        # CLIP QuickGELU (f32)
    x = x + jnp.dot(m.astype(BF16), wproj_ref[0],
                    preferred_element_type=F32) + b_p

    x_ref[...] = x

    # ---- last grid step: EOT-row selection (one-hot @ MXU) + ln_final + proj
    @pl.when(layer == LAYERS - 1)
    def _():
        eot = eot_ref[...]                                   # (B, 1) int32, flat b*L+pos
        row_iota = jax.lax.broadcasted_iota(jnp.int32, (B, BL), 1)
        sel = jnp.where(eot == row_iota, 1.0, 0.0)           # (B, BL) f32, exact select
        rows = jnp.dot(sel, x, preferred_element_type=F32)   # (B, D)
        hf = _ln(rows, lnfg_ref[...], lnfb_ref[...])
        out_ref[...] = jnp.dot(hf.astype(BF16), proj_ref[...],
                               preferred_element_type=F32).astype(out_ref.dtype)


# ------------------------------ parameters ----------------------------------
def init_params(key):
    ks = jax.random.split(key, 4 + LAYERS)
    params = {
        "token_embedding": 0.02 * jax.random.normal(ks[0], (VOCAB, D), F32),
        "positional_embedding": 0.01 * jax.random.normal(ks[1], (L, D), F32),
        "ln_final_g": jnp.ones((1, D), F32),
        "ln_final_b": jnp.zeros((1, D), F32),
        "text_projection": (D ** -0.5) * jax.random.normal(ks[2], (D, EMBED), F32),
        "layers": [],
    }
    for i in range(LAYERS):
        lk = jax.random.split(ks[4 + i], 4)
        params["layers"].append((
            jnp.ones((1, D), F32),                                    # ln1 gamma
            jnp.zeros((1, D), F32),                                   # ln1 beta
            0.02 * jax.random.normal(lk[0], (D, 3 * D), F32),         # W_qkv
            jnp.zeros((1, 3 * D), F32),                               # b_qkv
            0.02 * jax.random.normal(lk[1], (D, D), F32),             # W_out
            jnp.zeros((1, D), F32),                                   # b_out
            jnp.ones((1, D), F32),                                    # ln2 gamma
            jnp.zeros((1, D), F32),                                   # ln2 beta
            0.02 * jax.random.normal(lk[2], (D, 4 * D), F32),         # W_fc
            jnp.zeros((1, 4 * D), F32),                               # b_fc
            0.02 * jax.random.normal(lk[3], (4 * D, D), F32),         # W_proj
            jnp.zeros((1, D), F32),                                   # b_proj
        ))
    return params


def pack_params(params):
    """Stack per-layer weights (bf16) on a leading layer axis; pack the twelve
    small per-layer vectors into one lane-dense (LAYERS, 8, 128) f32 slab."""
    def pad_row(v):
        return jnp.pad(v, ((0, 0), (0, DFC - v.shape[1])))

    vec_rows, wqkv_s, wo_s, wfc_s, wproj_s = [], [], [], [], []
    for (g1, b1, wqkv, bqkv, wo, bo, g2, b2, wfc, bfc, wp, bp) in params["layers"]:
        vec_rows.append(jnp.concatenate(
            [pad_row(g1), pad_row(b1), pad_row(bo), pad_row(g2), pad_row(b2),
             pad_row(bp), pad_row(bqkv), pad_row(bfc)], axis=0))      # (8, DFC)
        wqkv_s.append(wqkv)
        wo_s.append(wo)
        wfc_s.append(wfc)
        wproj_s.append(wp)

    # block-diagonal (per batch) causal additive mask over the fused BL rows
    idx = jnp.arange(BL)
    same_batch = (idx[:, None] // L) == (idx[None, :] // L)
    causal_ok = (idx[None, :] % L) <= (idx[:, None] % L)
    mask = jnp.where(same_batch & causal_ok, 0.0, -1e9).astype(F32)   # (BL, BL)

    return {
        "emb": params["token_embedding"].astype(BF16),       # MXU operand
        "pos": params["positional_embedding"],               # f32 (VPU add)
        "attn_mask": mask,
        "wqkv": jnp.stack(wqkv_s).astype(BF16),              # (LAYERS, D, 3D)
        "wo": jnp.stack(wo_s).astype(BF16),                  # (LAYERS, D, D)
        "wfc": jnp.stack(wfc_s).astype(BF16),                # (LAYERS, D, 4D)
        "wproj": jnp.stack(wproj_s).astype(BF16),            # (LAYERS, 4D, D)
        "vec": jnp.stack(vec_rows),                          # (LAYERS, 8, DFC) f32
        "ln_final_g": params["ln_final_g"],
        "ln_final_b": params["ln_final_b"],
        "text_projection": params["text_projection"].astype(BF16),
    }


# ----------------------------- full forward ---------------------------------
def text_encoder_forward(text, packed):
    tok = text.reshape(BL, 1).astype(jnp.int32)              # (BL, 1) token ids
    eot = (jnp.arange(B, dtype=jnp.int32) * L
           + jnp.argmax(text, axis=-1).astype(jnp.int32)).reshape(B, 1)

    grid_spec = pltpu.PrefetchScalarGridSpec(
        num_scalar_prefetch=0,
        grid=(LAYERS,),
        in_specs=[
            pl.BlockSpec((BL, 1), lambda l: (0, 0)),              # token ids
            pl.BlockSpec((B, 1), lambda l: (0, 0)),               # flat EOT indices
            pl.BlockSpec((VOCAB, D), lambda l: (0, 0)),           # embedding table
            pl.BlockSpec((L, D), lambda l: (0, 0)),               # positional
            pl.BlockSpec((BL, BL), lambda l: (0, 0)),             # block-diag causal
            pl.BlockSpec((1, D, 3 * D), lambda l: (l, 0, 0)),     # W_qkv
            pl.BlockSpec((1, D, D), lambda l: (l, 0, 0)),         # W_out
            pl.BlockSpec((1, D, DFC), lambda l: (l, 0, 0)),       # W_fc
            pl.BlockSpec((1, DFC, D), lambda l: (l, 0, 0)),       # W_proj
            pl.BlockSpec((1, 8, DFC), lambda l: (l, 0, 0)),       # packed vectors
            pl.BlockSpec((1, D), lambda l: (0, 0)),               # ln_final gamma
            pl.BlockSpec((1, D), lambda l: (0, 0)),               # ln_final beta
            pl.BlockSpec((D, EMBED), lambda l: (0, 0)),           # text_projection
        ],
        out_specs=pl.BlockSpec((B, EMBED), lambda l: (0, 0)),
        scratch_shapes=[pltpu.VMEM((BL, D), F32)],                # resident activations
    )
    return pl.pallas_call(
        encoder_kernel,
        grid_spec=grid_spec,
        out_shape=jax.ShapeDtypeStruct((B, EMBED), F32),
        compiler_params=pltpu.CompilerParams(
            dimension_semantics=("arbitrary",),                   # layers are sequential
            vmem_limit_bytes=32 * 1024 * 1024),
    )(tok, eot, packed["emb"], packed["pos"], packed["attn_mask"],
      packed["wqkv"], packed["wo"], packed["wfc"], packed["wproj"],
      packed["vec"], packed["ln_final_g"], packed["ln_final_b"],
      packed["text_projection"])


# -------------------------- pure-JAX reference ------------------------------
def reference_forward(text, params):
    """Pure-JAX reference with the same mixed-precision policy as the kernel
    (bf16 matmul operands, f32 accumulation & element-wise math), mirroring the
    module's `.type(self.dtype)` (half-precision) execution."""
    emb = params["token_embedding"].astype(BF16)
    x = emb[text].astype(F32) + params["positional_embedding"][None]
    scale = 1.0 / math.sqrt(DH)
    causal = jnp.where(jnp.arange(L)[None, :] > jnp.arange(L)[:, None], -1e9, 0.0)
    for (g1, b1, wqkv, bqkv, wo, bo, g2, b2, wfc, bfc, wp, bp) in params["layers"]:
        h = _ln(x, g1, b1)
        qkv = jnp.dot(h.astype(BF16), wqkv.astype(BF16),
                      preferred_element_type=F32) + bqkv
        q, k, v = qkv[..., :D], qkv[..., D:2 * D], qkv[..., 2 * D:]
        outs = []
        for hh in range(H):
            sl = slice(hh * DH, (hh + 1) * DH)
            s = jnp.einsum("bld,bmd->blm", q[..., sl].astype(BF16),
                           k[..., sl].astype(BF16),
                           preferred_element_type=F32) * scale + causal
            s = s - jnp.max(s, axis=-1, keepdims=True)
            p = jnp.exp(s)
            p = p / jnp.sum(p, axis=-1, keepdims=True)
            outs.append(jnp.einsum("blm,bmd->bld", p.astype(BF16),
                                   v[..., sl].astype(BF16),
                                   preferred_element_type=F32))
        attn = jnp.dot(jnp.concatenate(outs, -1).astype(BF16), wo.astype(BF16),
                       preferred_element_type=F32) + bo
        x = x + attn
        m = jnp.dot(_ln(x, g2, b2).astype(BF16), wfc.astype(BF16),
                    preferred_element_type=F32) + bfc
        m = m * jax.nn.sigmoid(1.702 * m)
        x = x + jnp.dot(m.astype(BF16), wp.astype(BF16),
                        preferred_element_type=F32) + bp
    eot = jnp.argmax(text, axis=-1)
    rows = _ln(x[jnp.arange(B), eot], params["ln_final_g"], params["ln_final_b"])
    return jnp.dot(rows.astype(BF16), params["text_projection"].astype(BF16),
                   preferred_element_type=F32)


if __name__ == "__main__":
    key = jax.random.PRNGKey(0)
    k_param, k_text = jax.random.split(key)
    params = init_params(k_param)
    packed = pack_params(params)
    text = jax.random.randint(k_text, (B, L), 0, VOCAB, dtype=jnp.int32)

    out = jax.block_until_ready(text_encoder_forward(text, packed))
    ref = jax.block_until_ready(reference_forward(text, params))

    assert out.shape == (B, EMBED), out.shape
    err = float(jnp.max(jnp.abs(out - ref)))
    assert jnp.allclose(out, ref, atol=2e-3, rtol=2e-3), f"mismatch vs reference (max abs err {err})"
    print("KERNEL_OK")
</pallas_src>

<mosaic_0001>
module attributes {stable_mosaic.version = 11 : i64} {
  func.func @encoder_kernel(%arg0: i32, %arg1: memref<16x1xi32, #tpu.memory_space<vmem>>, %arg2: memref<2x1xi32, #tpu.memory_space<vmem>>, %arg3: memref<64x32xbf16, #tpu.memory_space<vmem>>, %arg4: memref<8x32xf32, #tpu.memory_space<vmem>>, %arg5: memref<16x16xf32, #tpu.memory_space<vmem>>, %arg6: memref<1x32x96xbf16, #tpu.memory_space<vmem>>, %arg7: memref<1x32x32xbf16, #tpu.memory_space<vmem>>, %arg8: memref<1x32x128xbf16, #tpu.memory_space<vmem>>, %arg9: memref<1x128x32xbf16, #tpu.memory_space<vmem>>, %arg10: memref<1x8x128xf32, #tpu.memory_space<vmem>>, %arg11: memref<1x32xf32, #tpu.memory_space<vmem>>, %arg12: memref<1x32xf32, #tpu.memory_space<vmem>>, %arg13: memref<32x16xbf16, #tpu.memory_space<vmem>>, %arg14: memref<2x16xf32, #tpu.memory_space<vmem>>, %arg15: memref<16x32xf32, #tpu.memory_space<vmem>>) attributes {dimension_semantics = [#tpu.dimension_semantics<arbitrary>], iteration_bounds = array<i64: 2>, scalar_prefetch = 0 : i64, scratch_operands = 1 : i64, tpu.core_type = #tpu.core_type<tc>, window_params = [{pipeline_mode = #tpu.pipeline_mode<synchronous>, transform_indices = @transform_0, window_bounds = array<i64: 16, 1>}, {pipeline_mode = #tpu.pipeline_mode<synchronous>, transform_indices = @transform_1, window_bounds = array<i64: 2, 1>}, {pipeline_mode = #tpu.pipeline_mode<synchronous>, transform_indices = @transform_2, window_bounds = array<i64: 64, 32>}, {pipeline_mode = #tpu.pipeline_mode<synchronous>, transform_indices = @transform_3, window_bounds = array<i64: 8, 32>}, {pipeline_mode = #tpu.pipeline_mode<synchronous>, transform_indices = @transform_4, window_bounds = array<i64: 16, 16>}, {transform_indices = @transform_5, window_bounds = array<i64: 1, 32, 96>}, {transform_indices = @transform_6, window_bounds = array<i64: 1, 32, 32>}, {transform_indices = @transform_7, window_bounds = array<i64: 1, 32, 128>}, {transform_indices = @transform_8, window_bounds = array<i64: 1, 128, 32>}, {transform_indices = @transform_9, window_bounds = array<i64: 1, 8, 128>}, {pipeline_mode = #tpu.pipeline_mode<synchronous>, transform_indices = @transform_10, window_bounds = array<i64: 1, 32>}, {pipeline_mode = #tpu.pipeline_mode<synchronous>, transform_indices = @transform_11, window_bounds = array<i64: 1, 32>}, {pipeline_mode = #tpu.pipeline_mode<synchronous>, transform_indices = @transform_12, window_bounds = array<i64: 32, 16>}, {pipeline_mode = #tpu.pipeline_mode<synchronous>, transform_indices = @transform_13, window_bounds = array<i64: 2, 16>}]} {
    %c0_i32 = arith.constant 0 : i32
    %0 = arith.cmpi eq, %arg0, %c0_i32 : i32
    %1 = arith.extui %0 : i1 to i32
    %c0_i32_0 = arith.constant 0 : i32
    %2 = arith.cmpi ne, %1, %c0_i32_0 : i32
    scf.if %2 {
      %c0_42 = arith.constant 0 : index
      %c0_43 = arith.constant 0 : index
      %153 = vector.load %arg1[%c0_42, %c0_43] : memref<16x1xi32, #tpu.memory_space<vmem>>, vector<16x1xi32>
      %154 = tpu.iota {dimensions = array<i32: 1>} : vector<16x64xi32>
      %155 = vector.broadcast %153 : vector<16x1xi32> to vector<16x64xi32>
      %156 = arith.cmpi eq, %155, %154 : vector<16x64xi32>
      %cst_44 = arith.constant 1.000000e+00 : f32
      %cst_45 = arith.constant 0.000000e+00 : f32
      %157 = vector.broadcast %cst_44 : f32 to vector<16x64xf32>
      %158 = vector.broadcast %cst_45 : f32 to vector<16x64xf32>
      %159 = arith.select %156, %157, %158 : vector<16x64xi1>, vector<16x64xf32>
      %160 = arith.truncf %159 : vector<16x64xf32> to vector<16x64xbf16>
      %c0_46 = arith.constant 0 : index
      %c0_47 = arith.constant 0 : index
      %161 = vector.load %arg3[%c0_46, %c0_47] : memref<64x32xbf16, #tpu.memory_space<vmem>>, vector<64x32xbf16>
      %cst_48 = arith.constant dense<0.000000e+00> : vector<16x32xf32>
      %162 = tpu.matmul %160, %161, %cst_48 {dimension_numbers = #tpu.dot_dimension_numbers<[1], [0], [0], [1], [0, 0, 1, 1], [], []>} : vector<16x64xbf16>, vector<64x32xbf16>, vector<16x32xf32> -> vector<16x32xf32>
      %163 = vector.shape_cast %162 : vector<16x32xf32> to vector<2x8x32xf32>
      %c0_49 = arith.constant 0 : index
      %c0_50 = arith.constant 0 : index
      %164 = vector.load %arg4[%c0_49, %c0_50] : memref<8x32xf32, #tpu.memory_space<vmem>>, vector<8x32xf32>
      %165 = vector.shape_cast %164 : vector<8x32xf32> to vector<1x8x32xf32>
      %166 = vector.broadcast %165 : vector<1x8x32xf32> to vector<2x8x32xf32>
      %167 = arith.addf %163, %166 : vector<2x8x32xf32>
      %168 = vector.shape_cast %167 : vector<2x8x32xf32> to vector<16x32xf32>
      %c0_51 = arith.constant 0 : index
      %c0_52 = arith.constant 0 : index
      %169 = vector.load %arg15[%c0_51, %c0_52] : memref<16x32xf32, #tpu.memory_space<vmem>>, vector<16x32xf32>
      tpu.vector_store %arg15[%c0_51, %c0_52], %168 {strides = array<i32>} : memref<16x32xf32, #tpu.memory_space<vmem>>, vector<16x32xf32>,
    } else {
    }
    %c0 = arith.constant 0 : index
    %c0_1 = arith.constant 0 : index
    %c0_2 = arith.constant 0 : index
    %3 = vector.load %arg10[%c0, %c0_1, %c0_2] : memref<1x8x128xf32, #tpu.memory_space<vmem>>, vector<1x8x128xf32>
    %4 = vector.shape_cast %3 : vector<1x8x128xf32> to vector<8x128xf32>
    %5 = vector.extract_strided_slice %4 {offsets = [0, 0], sizes = [1, 32], strides = [1, 1]} : vector<8x128xf32> to vector<1x32xf32>
    %6 = vector.extract_strided_slice %4 {offsets = [1, 0], sizes = [1, 32], strides = [1, 1]} : vector<8x128xf32> to vector<1x32xf32>
    %7 = vector.extract_strided_slice %4 {offsets = [2, 0], sizes = [1, 32], strides = [1, 1]} : vector<8x128xf32> to vector<1x32xf32>
    %8 = vector.extract_strided_slice %4 {offsets = [3, 0], sizes = [1, 32], strides = [1, 1]} : vector<8x128xf32> to vector<1x32xf32>
    %9 = vector.extract_strided_slice %4 {offsets = [4, 0], sizes = [1, 32], strides = [1, 1]} : vector<8x128xf32> to vector<1x32xf32>
    %10 = vector.extract_strided_slice %4 {offsets = [5, 0], sizes = [1, 32], strides = [1, 1]} : vector<8x128xf32> to vector<1x32xf32>
    %11 = vector.extract_strided_slice %4 {offsets = [6, 0], sizes = [1, 96], strides = [1, 1]} : vector<8x128xf32> to vector<1x96xf32>
    %12 = vector.extract_strided_slice %4 {offsets = [7, 0], sizes = [1, 128], strides = [1, 1]} : vector<8x128xf32> to vector<1x128xf32>
    %c0_3 = arith.constant 0 : index
    %c0_4 = arith.constant 0 : index
    %13 = vector.load %arg15[%c0_3, %c0_4] : memref<16x32xf32, #tpu.memory_space<vmem>>, vector<16x32xf32>
    %cst = arith.constant dense<0.000000e+00> : vector<16xf32>
    %14 = vector.multi_reduction <add>, %13, %cst [1] : vector<16x32xf32> to vector<16xf32>
    %15 = vector.shape_cast %14 : vector<16xf32> to vector<16x1xf32>
    %cst_5 = arith.constant 3.200000e+01 : f32
    %16 = vector.broadcast %cst_5 : f32 to vector<16x1xf32>
    %17 = arith.divf %15, %16 : vector<16x1xf32>
    %18 = vector.broadcast %17 : vector<16x1xf32> to vector<16x32xf32>
    %19 = arith.subf %13, %18 : vector<16x32xf32>
    %20 = arith.mulf %19, %19 : vector<16x32xf32>
    %cst_6 = arith.constant dense<0.000000e+00> : vector<16xf32>
    %21 = vector.multi_reduction <add>, %20, %cst_6 [1] : vector<16x32xf32> to vector<16xf32>
    %22 = vector.shape_cast %21 : vector<16xf32> to vector<16x1xf32>
    %cst_7 = arith.constant 3.200000e+01 : f32
    %23 = vector.broadcast %cst_7 : f32 to vector<16x1xf32>
    %24 = arith.divf %22, %23 : vector<16x1xf32>
    %25 = vector.broadcast %17 : vector<16x1xf32> to vector<16x32xf32>
    %26 = arith.subf %13, %25 : vector<16x32xf32>
    %cst_8 = arith.constant 9.99999974E-6 : f32
    %27 = vector.broadcast %cst_8 : f32 to vector<16x1xf32>
    %28 = arith.addf %24, %27 : vector<16x1xf32>
    %29 = math.rsqrt %28 : vector<16x1xf32>
    %30 = vector.broadcast %29 : vector<16x1xf32> to vector<16x32xf32>
    %31 = arith.mulf %26, %30 : vector<16x32xf32>
    %32 = vector.broadcast %5 : vector<1x32xf32> to vector<16x32xf32>
    %33 = arith.mulf %31, %32 : vector<16x32xf32>
    %34 = vector.broadcast %6 : vector<1x32xf32> to vector<16x32xf32>
    %35 = arith.addf %33, %34 : vector<16x32xf32>
    %36 = arith.truncf %35 : vector<16x32xf32> to vector<16x32xbf16>
    %c0_9 = arith.constant 0 : index
    %c0_10 = arith.constant 0 : index
    %c0_11 = arith.constant 0 : index
    %37 = vector.load %arg6[%c0_9, %c0_10, %c0_11] : memref<1x32x96xbf16, #tpu.memory_space<vmem>>, vector<1x32x96xbf16>
    %38 = vector.shape_cast %37 : vector<1x32x96xbf16> to vector<32x96xbf16>
    %cst_12 = arith.constant dense<0.000000e+00> : vector<16x96xf32>
    %39 = tpu.matmul %36, %38, %cst_12 {dimension_numbers = #tpu.dot_dimension_numbers<[1], [0], [0], [1], [0, 0, 1, 1], [], []>} : vector<16x32xbf16>, vector<32x96xbf16>, vector<16x96xf32> -> vector<16x96xf32>
    %40 = vector.broadcast %11 : vector<1x96xf32> to vector<16x96xf32>
    %41 = arith.addf %39, %40 : vector<16x96xf32>
    %42 = vector.extract_strided_slice %41 {offsets = [0, 0], sizes = [16, 8], strides = [1, 1]} : vector<16x96xf32> to vector<16x8xf32>
    %43 = vector.extract_strided_slice %41 {offsets = [0, 8], sizes = [16, 8], strides = [1, 1]} : vector<16x96xf32> to vector<16x8xf32>
    %44 = vector.extract_strided_slice %41 {offsets = [0, 16], sizes = [16, 8], strides = [1, 1]} : vector<16x96xf32> to vector<16x8xf32>
    %45 = vector.extract_strided_slice %41 {offsets = [0, 24], sizes = [16, 8], strides = [1, 1]} : vector<16x96xf32> to vector<16x8xf32>
    %46 = vector.shape_cast %42 : vector<16x8xf32> to vector<1x16x8xf32>
    %47 = vector.shape_cast %43 : vector<16x8xf32> to vector<1x16x8xf32>
    %48 = vector.shape_cast %44 : vector<16x8xf32> to vector<1x16x8xf32>
    %49 = vector.shape_cast %45 : vector<16x8xf32> to vector<1x16x8xf32>
    %50 = tpu.concatenate %46, %47, %48, %49 in 0 : vector<1x16x8xf32>, vector<1x16x8xf32>, vector<1x16x8xf32>, vector<1x16x8xf32> -> vector<4x16x8xf32>
    %51 = vector.extract_strided_slice %41 {offsets = [0, 32], sizes = [16, 8], strides = [1, 1]} : vector<16x96xf32> to vector<16x8xf32>
    %52 = vector.extract_strided_slice %41 {offsets = [0, 40], sizes = [16, 8], strides = [1, 1]} : vector<16x96xf32> to vector<16x8xf32>
    %53 = vector.extract_strided_slice %41 {offsets = [0, 48], sizes = [16, 8], strides = [1, 1]} : vector<16x96xf32> to vector<16x8xf32>
    %54 = vector.extract_strided_slice %41 {offsets = [0, 56], sizes = [16, 8], strides = [1, 1]} : vector<16x96xf32> to vector<16x8xf32>
    %55 = vector.shape_cast %51 : vector<16x8xf32> to vector<1x16x8xf32>
    %56 = vector.shape_cast %52 : vector<16x8xf32> to vector<1x16x8xf32>
    %57 = vector.shape_cast %53 : vector<16x8xf32> to vector<1x16x8xf32>
    %58 = vector.shape_cast %54 : vector<16x8xf32> to vector<1x16x8xf32>
    %59 = tpu.concatenate %55, %56, %57, %58 in 0 : vector<1x16x8xf32>, vector<1x16x8xf32>, vector<1x16x8xf32>, vector<1x16x8xf32> -> vector<4x16x8xf32>
    %60 = vector.extract_strided_slice %41 {offsets = [0, 64], sizes = [16, 8], strides = [1, 1]} : vector<16x96xf32> to vector<16x8xf32>
    %61 = vector.extract_strided_slice %41 {offsets = [0, 72], sizes = [16, 8], strides = [1, 1]} : vector<16x96xf32> to vector<16x8xf32>
    %62 = vector.extract_strided_slice %41 {offsets = [0, 80], sizes = [16, 8], strides = [1, 1]} : vector<16x96xf32> to vector<16x8xf32>
    %63 = vector.extract_strided_slice %41 {offsets = [0, 88], sizes = [16, 8], strides = [1, 1]} : vector<16x96xf32> to vector<16x8xf32>
    %64 = vector.shape_cast %60 : vector<16x8xf32> to vector<1x16x8xf32>
    %65 = vector.shape_cast %61 : vector<16x8xf32> to vector<1x16x8xf32>
    %66 = vector.shape_cast %62 : vector<16x8xf32> to vector<1x16x8xf32>
    %67 = vector.shape_cast %63 : vector<16x8xf32> to vector<1x16x8xf32>
    %68 = tpu.concatenate %64, %65, %66, %67 in 0 : vector<1x16x8xf32>, vector<1x16x8xf32>, vector<1x16x8xf32>, vector<1x16x8xf32> -> vector<4x16x8xf32>
    %69 = arith.truncf %50 : vector<4x16x8xf32> to vector<4x16x8xbf16>
    %70 = arith.truncf %59 : vector<4x16x8xf32> to vector<4x16x8xbf16>
    "tpu.trace_start"() <{level = 10 : i32, message = "hld,hmd->hlm"}> : () -> ()
    %cst_13 = arith.constant dense<0.000000e+00> : vector<4x16x16xf32>
    %71 = tpu.matmul %69, %70, %cst_13 {dimension_numbers = #tpu.dot_dimension_numbers<[2], [2], [1], [1], [0, 0, 0, 1, 1, 1], [0], [0]>} : vector<4x16x8xbf16>, vector<4x16x8xbf16>, vector<4x16x16xf32> -> vector<4x16x16xf32>
    "tpu.trace_stop"() : () -> ()
    %cst_14 = arith.constant 0.353553385 : f32
    %72 = vector.broadcast %cst_14 : f32 to vector<4x16x16xf32>
    %73 = arith.mulf %71, %72 : vector<4x16x16xf32>
    %c0_15 = arith.constant 0 : index
    %c0_16 = arith.constant 0 : index
    %74 = vector.load %arg5[%c0_15, %c0_16] : memref<16x16xf32, #tpu.memory_space<vmem>>, vector<16x16xf32>
    %75 = vector.shape_cast %74 : vector<16x16xf32> to vector<1x16x16xf32>
    %76 = vector.broadcast %75 : vector<1x16x16xf32> to vector<4x16x16xf32>
    %77 = arith.addf %73, %76 : vector<4x16x16xf32>
    %cst_17 = arith.constant dense<0xFF800000> : vector<4x16xf32>
    %78 = vector.multi_reduction <maximumf>, %77, %cst_17 [2] : vector<4x16x16xf32> to vector<4x16xf32>
    %79 = vector.shape_cast %78 : vector<4x16xf32> to vector<4x16x1xf32>
    %80 = vector.broadcast %79 : vector<4x16x1xf32> to vector<4x16x16xf32>
    %81 = arith.subf %77, %80 : vector<4x16x16xf32>
    %82 = math.exp %81 : vector<4x16x16xf32>
    %cst_18 = arith.constant dense<0.000000e+00> : vector<4x16xf32>
    %83 = vector.multi_reduction <add>, %82, %cst_18 [2] : vector<4x16x16xf32> to vector<4x16xf32>
    %84 = vector.shape_cast %83 : vector<4x16xf32> to vector<4x16x1xf32>
    %85 = vector.broadcast %84 : vector<4x16x1xf32> to vector<4x16x16xf32>
    %86 = arith.divf %82, %85 : vector<4x16x16xf32>
    %87 = arith.truncf %86 : vector<4x16x16xf32> to vector<4x16x16xbf16>
    %88 = arith.truncf %68 : vector<4x16x8xf32> to vector<4x16x8xbf16>
    "tpu.trace_start"() <{level = 10 : i32, message = "hlm,hmd->hld"}> : () -> ()
    %cst_19 = arith.constant dense<0.000000e+00> : vector<4x16x8xf32>
    %89 = tpu.matmul %87, %88, %cst_19 {dimension_numbers = #tpu.dot_dimension_numbers<[2], [1], [1], [2], [0, 0, 0, 1, 1, 2], [0], [0]>} : vector<4x16x16xbf16>, vector<4x16x8xbf16>, vector<4x16x8xf32> -> vector<4x16x8xf32>
    "tpu.trace_stop"() : () -> ()
    %90 = vector.extract_strided_slice %89 {offsets = [0, 0, 0], sizes = [1, 16, 8], strides = [1, 1, 1]} : vector<4x16x8xf32> to vector<1x16x8xf32>
    %91 = vector.shape_cast %90 : vector<1x16x8xf32> to vector<16x8xf32>
    %92 = vector.extract_strided_slice %89 {offsets = [1, 0, 0], sizes = [1, 16, 8], strides = [1, 1, 1]} : vector<4x16x8xf32> to vector<1x16x8xf32>
    %93 = vector.shape_cast %92 : vector<1x16x8xf32> to vector<16x8xf32>
    %94 = vector.extract_strided_slice %89 {offsets = [2, 0, 0], sizes = [1, 16, 8], strides = [1, 1, 1]} : vector<4x16x8xf32> to vector<1x16x8xf32>
    %95 = vector.shape_cast %94 : vector<1x16x8xf32> to vector<16x8xf32>
    %96 = vector.extract_strided_slice %89 {offsets = [3, 0, 0], sizes = [1, 16, 8], strides = [1, 1, 1]} : vector<4x16x8xf32> to vector<1x16x8xf32>
    %97 = vector.shape_cast %96 : vector<1x16x8xf32> to vector<16x8xf32>
    %98 = tpu.concatenate %91, %93, %95, %97 in 1 : vector<16x8xf32>, vector<16x8xf32>, vector<16x8xf32>, vector<16x8xf32> -> vector<16x32xf32>
    %99 = arith.truncf %98 : vector<16x32xf32> to vector<16x32xbf16>
    %c0_20 = arith.constant 0 : index
    %c0_21 = arith.constant 0 : index
    %c0_22 = arith.constant 0 : index
    %100 = vector.load %arg7[%c0_20, %c0_21, %c0_22] : memref<1x32x32xbf16, #tpu.memory_space<vmem>>, vector<1x32x32xbf16>
    %101 = vector.shape_cast %100 : vector<1x32x32xbf16> to vector<32x32xbf16>
    %cst_23 = arith.constant dense<0.000000e+00> : vector<16x32xf32>
    %102 = tpu.matmul %99, %101, %cst_23 {dimension_numbers = #tpu.dot_dimension_numbers<[1], [0], [0], [1], [0, 0, 1, 1], [], []>} : vector<16x32xbf16>, vector<32x32xbf16>, vector<16x32xf32> -> vector<16x32xf32>
    %103 = vector.broadcast %7 : vector<1x32xf32> to vector<16x32xf32>
    %104 = arith.addf %102, %103 : vector<16x32xf32>
    %105 = arith.addf %13, %104 : vector<16x32xf32>
    %cst_24 = arith.constant dense<0.000000e+00> : vector<16xf32>
    %106 = vector.multi_reduction <add>, %105, %cst_24 [1] : vector<16x32xf32> to vector<16xf32>
    %107 = vector.shape_cast %106 : vector<16xf32> to vector<16x1xf32>
    %cst_25 = arith.constant 3.200000e+01 : f32
    %108 = vector.broadcast %cst_25 : f32 to vector<16x1xf32>
    %109 = arith.divf %107, %108 : vector<16x1xf32>
    %110 = vector.broadcast %109 : vector<16x1xf32> to vector<16x32xf32>
    %111 = arith.subf %105, %110 : vector<16x32xf32>
    %112 = arith.mulf %111, %111 : vector<16x32xf32>
    %cst_26 = arith.constant dense<0.000000e+00> : vector<16xf32>
    %113 = vector.multi_reduction <add>, %112, %cst_26 [1] : vector<16x32xf32> to vector<16xf32>
    %114 = vector.shape_cast %113 : vector<16xf32> to vector<16x1xf32>
    %cst_27 = arith.constant 3.200000e+01 : f32
    %115 = vector.broadcast %cst_27 : f32 to vector<16x1xf32>
    %116 = arith.divf %114, %115 : vector<16x1xf32>
    %117 = vector.broadcast %109 : vector<16x1xf32> to vector<16x32xf32>
    %118 = arith.subf %105, %117 : vector<16x32xf32>
    %cst_28 = arith.constant 9.99999974E-6 : f32
    %119 = vector.broadcast %cst_28 : f32 to vector<16x1xf32>
    %120 = arith.addf %116, %119 : vector<16x1xf32>
    %121 = math.rsqrt %120 : vector<16x1xf32>
    %122 = vector.broadcast %121 : vector<16x1xf32> to vector<16x32xf32>
    %123 = arith.mulf %118, %122 : vector<16x32xf32>
    %124 = vector.broadcast %8 : vector<1x32xf32> to vector<16x32xf32>
    %125 = arith.mulf %123, %124 : vector<16x32xf32>
    %126 = vector.broadcast %9 : vector<1x32xf32> to vector<16x32xf32>
    %127 = arith.addf %125, %126 : vector<16x32xf32>
    %128 = arith.truncf %127 : vector<16x32xf32> to vector<16x32xbf16>
    %c0_29 = arith.constant 0 : index
    %c0_30 = arith.constant 0 : index
    %c0_31 = arith.constant 0 : index
    %129 = vector.load %arg8[%c0_29, %c0_30, %c0_31] : memref<1x32x128xbf16, #tpu.memory_space<vmem>>, vector<1x32x128xbf16>
    %130 = vector.shape_cast %129 : vector<1x32x128xbf16> to vector<32x128xbf16>
    %cst_32 = arith.constant dense<0.000000e+00> : vector<16x128xf32>
    %131 = tpu.matmul %128, %130, %cst_32 {dimension_numbers = #tpu.dot_dimension_numbers<[1], [0], [0], [1], [0, 0, 1, 1], [], []>} : vector<16x32xbf16>, vector<32x128xbf16>, vector<16x128xf32> -> vector<16x128xf32>
    %132 = vector.broadcast %12 : vector<1x128xf32> to vector<16x128xf32>
    %133 = arith.addf %131, %132 : vector<16x128xf32>
    %cst_33 = arith.constant 1.702000e+00 : f32
    %134 = vector.broadcast %cst_33 : f32 to vector<16x128xf32>
    %135 = arith.mulf %134, %133 : vector<16x128xf32>
    %136 = arith.negf %135 : vector<16x128xf32>
    %137 = math.exp %136 : vector<16x128xf32>
    %cst_34 = arith.constant 1.000000e+00 : f32
    %138 = vector.broadcast %cst_34 : f32 to vector<16x128xf32>
    %139 = arith.addf %138, %137 : vector<16x128xf32>
    %140 = arith.divf %138, %139 : vector<16x128xf32>
    %141 = arith.mulf %133, %140 : vector<16x128xf32>
    %142 = arith.truncf %141 : vector<16x128xf32> to vector<16x128xbf16>
    %c0_35 = arith.constant 0 : index
    %c0_36 = arith.constant 0 : index
    %c0_37 = arith.constant 0 : index
    %143 = vector.load %arg9[%c0_35, %c0_36, %c0_37] : memref<1x128x32xbf16, #tpu.memory_space<vmem>>, vector<1x128x32xbf16>
    %144 = vector.shape_cast %143 : vector<1x128x32xbf16> to vector<128x32xbf16>
    %cst_38 = arith.constant dense<0.000000e+00> : vector<16x32xf32>
    %145 = tpu.matmul %142, %144, %cst_38 {dimension_numbers = #tpu.dot_dimension_numbers<[1], [0], [0], [1], [0, 0, 1, 1], [], []>} : vector<16x128xbf16>, vector<128x32xbf16>, vector<16x32xf32> -> vector<16x32xf32>
    %146 = arith.addf %105, %145 : vector<16x32xf32>
    %147 = vector.broadcast %10 : vector<1x32xf32> to vector<16x32xf32>
    %148 = arith.addf %146, %147 : vector<16x32xf32>
    %c0_39 = arith.constant 0 : index
    %c0_40 = arith.constant 0 : index
    %149 = vector.load %arg15[%c0_39, %c0_40] : memref<16x32xf32, #tpu.memory_space<vmem>>, vector<16x32xf32>
    tpu.vector_store %arg15[%c0_39, %c0_40], %148 {strides = array<i32>} : memref<16x32xf32, #tpu.memory_space<vmem>>, vector<16x32xf32>,
    %c1_i32 = arith.constant 1 : i32
    %150 = arith.cmpi eq, %arg0, %c1_i32 : i32
    %151 = arith.extui %150 : i1 to i32
    %c0_i32_41 = arith.constant 0 : i32
    %152 = arith.cmpi ne, %151, %c0_i32_41 : i32
    scf.if %152 {
      %c0_42 = arith.constant 0 : index
      %c0_43 = arith.constant 0 : index
      %153 = vector.load %arg2[%c0_42, %c0_43] : memref<2x1xi32, #tpu.memory_space<vmem>>, vector<2x1xi32>
      %154 = tpu.iota {dimensions = array<i32: 1>} : vector<2x16xi32>
      %155 = vector.broadcast %153 : vector<2x1xi32> to vector<2x16xi32>
      %156 = arith.cmpi eq, %155, %154 : vector<2x16xi32>
      %cst_44 = arith.constant 1.000000e+00 : f32
      %cst_45 = arith.constant 0.000000e+00 : f32
      %157 = vector.broadcast %cst_44 : f32 to vector<2x16xf32>
      %158 = vector.broadcast %cst_45 : f32 to vector<2x16xf32>
      %159 = arith.select %156, %157, %158 : vector<2x16xi1>, vector<2x16xf32>
      %cst_46 = arith.constant dense<0.000000e+00> : vector<2x32xf32>
      %160 = tpu.matmul %159, %148, %cst_46 {dimension_numbers = #tpu.dot_dimension_numbers<[1], [0], [0], [1], [0, 0, 1, 1], [], []>} : vector<2x16xf32>, vector<16x32xf32>, vector<2x32xf32> -> vector<2x32xf32>
      %c0_47 = arith.constant 0 : index
      %c0_48 = arith.constant 0 : index
      %161 = vector.load %arg11[%c0_47, %c0_48] : memref<1x32xf32, #tpu.memory_space<vmem>>, vector<1x32xf32>
      %c0_49 = arith.constant 0 : index
      %c0_50 = arith.constant 0 : index
      %162 = vector.load %arg12[%c0_49, %c0_50] : memref<1x32xf32, #tpu.memory_space<vmem>>, vector<1x32xf32>
      %cst_51 = arith.constant dense<0.000000e+00> : vector<2xf32>
      %163 = vector.multi_reduction <add>, %160, %cst_51 [1] : vector<2x32xf32> to vector<2xf32>
      %164 = vector.shape_cast %163 : vector<2xf32> to vector<2x1xf32>
      %cst_52 = arith.constant 3.200000e+01 : f32
      %165 = vector.broadcast %cst_52 : f32 to vector<2x1xf32>
      %166 = arith.divf %164, %165 : vector<2x1xf32>
      %167 = vector.broadcast %166 : vector<2x1xf32> to vector<2x32xf32>
      %168 = arith.subf %160, %167 : vector<2x32xf32>
      %169 = arith.mulf %168, %168 : vector<2x32xf32>
      %cst_53 = arith.constant dense<0.000000e+00> : vector<2xf32>
      %170 = vector.multi_reduction <add>, %169, %cst_53 [1] : vector<2x32xf32> to vector<2xf32>
      %171 = vector.shape_cast %170 : vector<2xf32> to vector<2x1xf32>
      %cst_54 = arith.constant 3.200000e+01 : f32
      %172 = vector.broadcast %cst_54 : f32 to vector<2x1xf32>
      %173 = arith.divf %171, %172 : vector<2x1xf32>
      %174 = vector.broadcast %166 : vector<2x1xf32> to vector<2x32xf32>
      %175 = arith.subf %160, %174 : vector<2x32xf32>
      %cst_55 = arith.constant 9.99999974E-6 : f32
      %176 = vector.broadcast %cst_55 : f32 to vector<2x1xf32>
      %177 = arith.addf %173, %176 : vector<2x1xf32>
      %178 = math.rsqrt %177 : vector<2x1xf32>
      %179 = vector.broadcast %178 : vector<2x1xf32> to vector<2x32xf32>
      %180 = arith.mulf %175, %179 : vector<2x32xf32>
      %181 = vector.broadcast %161 : vector<1x32xf32> to vector<2x32xf32>
      %182 = arith.mulf %180, %181 : vector<2x32xf32>
      %183 = vector.broadcast %162 : vector<1x32xf32> to vector<2x32xf32>
      %184 = arith.addf %182, %183 : vector<2x32xf32>
      %185 = arith.truncf %184 : vector<2x32xf32> to vector<2x32xbf16>
      %c0_56 = arith.constant 0 : index
      %c0_57 = arith.constant 0 : index
      %186 = vector.load %arg13[%c0_56, %c0_57] : memref<32x16xbf16, #tpu.memory_space<vmem>>, vector<32x16xbf16>
      %cst_58 = arith.constant dense<0.000000e+00> : vector<2x16xf32>
      %187 = tpu.matmul %185, %186, %cst_58 {dimension_numbers = #tpu.dot_dimension_numbers<[1], [0], [0], [1], [0, 0, 1, 1], [], []>} : vector<2x32xbf16>, vector<32x16xbf16>, vector<2x16xf32> -> vector<2x16xf32>
      %c0_59 = arith.constant 0 : index
      %c0_60 = arith.constant 0 : index
      %188 = vector.load %arg14[%c0_59, %c0_60] : memref<2x16xf32, #tpu.memory_space<vmem>>, vector<2x16xf32>
      tpu.vector_store %arg14[%c0_59, %c0_60], %187 {strides = array<i32>} : memref<2x16xf32, #tpu.memory_space<vmem>>, vector<2x16xf32>,
    } else {
    }
    return
  }
  func.func @transform_0(%arg0: i32) -> (i32, i32) {
    %c0_i32 = arith.constant 0 : i32
    %c0_i32_0 = arith.constant 0 : i32
    %c0_i32_1 = arith.constant 0 : i32
    return %c0_i32, %c0_i32_0 : i32, i32
  }
  func.func @transform_1(%arg0: i32) -> (i32, i32) {
    %c0_i32 = arith.constant 0 : i32
    %c0_i32_0 = arith.constant 0 : i32
    %c0_i32_1 = arith.constant 0 : i32
    return %c0_i32, %c0_i32_0 : i32, i32
  }
  func.func @transform_2(%arg0: i32) -> (i32, i32) {
    %c0_i32 = arith.constant 0 : i32
    %c0_i32_0 = arith.constant 0 : i32
    %c0_i32_1 = arith.constant 0 : i32
    return %c0_i32, %c0_i32_0 : i32, i32
  }
  func.func @transform_3(%arg0: i32) -> (i32, i32) {
    %c0_i32 = arith.constant 0 : i32
    %c0_i32_0 = arith.constant 0 : i32
    %c0_i32_1 = arith.constant 0 : i32
    return %c0_i32, %c0_i32_0 : i32, i32
  }
  func.func @transform_4(%arg0: i32) -> (i32, i32) {
    %c0_i32 = arith.constant 0 : i32
    %c0_i32_0 = arith.constant 0 : i32
    %c0_i32_1 = arith.constant 0 : i32
    return %c0_i32, %c0_i32_0 : i32, i32
  }
  func.func @transform_5(%arg0: i32) -> (i32, i32, i32) {
    %c0_i32 = arith.constant 0 : i32
    %c0_i32_0 = arith.constant 0 : i32
    %c0_i32_1 = arith.constant 0 : i32
    return %arg0, %c0_i32, %c0_i32_0 : i32, i32, i32
  }
  func.func @transform_6(%arg0: i32) -> (i32, i32, i32) {
    %c0_i32 = arith.constant 0 : i32
    %c0_i32_0 = arith.constant 0 : i32
    %c0_i32_1 = arith.constant 0 : i32
    return %arg0, %c0_i32, %c0_i32_0 : i32, i32, i32
  }
  func.func @transform_7(%arg0: i32) -> (i32, i32, i32) {
    %c0_i32 = arith.constant 0 : i32
    %c0_i32_0 = arith.constant 0 : i32
    %c0_i32_1 = arith.constant 0 : i32
    return %arg0, %c0_i32, %c0_i32_0 : i32, i32, i32
  }
  func.func @transform_8(%arg0: i32) -> (i32, i32, i32) {
    %c0_i32 = arith.constant 0 : i32
    %c0_i32_0 = arith.constant 0 : i32
    %c0_i32_1 = arith.constant 0 : i32
    return %arg0, %c0_i32, %c0_i32_0 : i32, i32, i32
  }
  func.func @transform_9(%arg0: i32) -> (i32, i32, i32) {
    %c0_i32 = arith.constant 0 : i32
    %c0_i32_0 = arith.constant 0 : i32
    %c0_i32_1 = arith.constant 0 : i32
    return %arg0, %c0_i32, %c0_i32_0 : i32, i32, i32
  }
  func.func @transform_10(%arg0: i32) -> (i32, i32) {
    %c0_i32 = arith.constant 0 : i32
    %c0_i32_0 = arith.constant 0 : i32
    %c0_i32_1 = arith.constant 0 : i32
    return %c0_i32, %c0_i32_0 : i32, i32
  }
  func.func @transform_11(%arg0: i32) -> (i32, i32) {
    %c0_i32 = arith.constant 0 : i32
    %c0_i32_0 = arith.constant 0 : i32
    %c0_i32_1 = arith.constant 0 : i32
    return %c0_i32, %c0_i32_0 : i32, i32
  }
  func.func @transform_12(%arg0: i32) -> (i32, i32) {
    %c0_i32 = arith.constant 0 : i32
    %c0_i32_0 = arith.constant 0 : i32
    %c0_i32_1 = arith.constant 0 : i32
    return %c0_i32, %c0_i32_0 : i32, i32
  }
  func.func @transform_13(%arg0: i32) -> (i32, i32) {
    %c0_i32 = arith.constant 0 : i32
    %c0_i32_0 = arith.constant 0 : i32
    %c0_i32_1 = arith.constant 0 : i32
    return %c0_i32, %c0_i32_0 : i32, i32
  }
}

</mosaic_0001>

<llo_original>
// kernel: tpu_custom_call.1
$region0: #{tpu_custom_call.1}
  #allocation0 [shape = 'u32[]', space=smem, size = 0x4, offset = 0x4, fixed_abs, tag = 'smem constant byte address 0x4 - core index']
  #allocation1 [shape = 'u32[144,128]{1,0:T(1,128)}', space=vmem, size = 0x12000, scoped, tag = 'internal scratch']
  #allocation2 [shape = 'f32[16,32]{1,0:T(8,128)}', space=vmem, size = 0x2000, scoped, tag = 'scratch operand']
  %s0 = inlined_call_operand.vmem [shape: s32[16,1], index: 0, kind: input, shape index: {}]
  %s1 = inlined_call_operand.vmem [shape: s32[2,1], index: 1, kind: input, shape index: {}]
  %s2 = inlined_call_operand.vmem [shape: bf16[64,32], index: 2, kind: input, shape index: {}]
  %s3 = inlined_call_operand.vmem [shape: f32[8,32], index: 3, kind: input, shape index: {}]
  %s4 = inlined_call_operand.vmem [shape: f32[16,16], index: 4, kind: input, shape index: {}]
  %s5 = inlined_call_operand.vmem [shape: bf16[2,32,96], index: 5, kind: input, shape index: {}]
  %s6 = inlined_call_operand.vmem [shape: bf16[2,32,32], index: 6, kind: input, shape index: {}]
  %s7 = inlined_call_operand.vmem [shape: bf16[2,32,128], index: 7, kind: input, shape index: {}]
  %s8 = inlined_call_operand.vmem [shape: bf16[2,128,32], index: 8, kind: input, shape index: {}]
  %s9 = inlined_call_operand.vmem [shape: f32[2,8,128], index: 9, kind: input, shape index: {}]
  %s10 = inlined_call_operand.vmem [shape: f32[1,32], index: 10, kind: input, shape index: {}]
  %s11 = inlined_call_operand.vmem [shape: f32[1,32], index: 11, kind: input, shape index: {}]
  %s12 = inlined_call_operand.vmem [shape: bf16[32,16], index: 12, kind: input, shape index: {}]
  %s13 = inlined_call_operand.hbm [shape: f32[2,16], index: 13, kind: output, shape index: {}]
  %s14 = sld [smem:[#allocation0]]
  $region93: #{tpu_custom_call.1} parent=0
    _
  %s16 = ssub.s32 1, %s14
  %s17 = scalar_select 0, %s16, %s14
  $region1: #{tpu_custom_call.1} parent=0
    #allocation3 [shape = 'u8[1024]{0}', space=vmem, size = 0x400, scoped, tag = 'output window, operand 0, single buffered']
    #allocation4 [shape = 's32[2]{0}', space=sflag, size = 0x8, scoped, tag = 'scoped memory for tpu_custom_call.1']
    %18 = vsyncpa [#allocation4], 0
    loop: start=0, step=1, limit=4
    $region2: #{tpu_custom_call.1} parent=1 // loop_pre_header
      _
    $region3: #{tpu_custom_call.1} parent=1 // loop_header
      %s20 = sphi 0, %s24
      %p21 = scmp.ge.s32.totalorder %s20, 4
      %s28 = sphi 0, %s28
      %s30 = sphi 0, %s28
      %s31 = sphi 0, %s30
      %s45 = sphi 0, %s31
      %s49 = sphi 0, %s49
      %s51 = sphi 0, %s49
      %s52 = sphi 0, %s51
      %s66 = sphi 0, %s52
      %s70 = sphi 0, %s70
      %s72 = sphi 0, %s70
      %s73 = sphi 0, %s72
      %s87 = sphi 0, %s73
      %s91 = sphi 0, %s91
      %s93 = sphi 0, %s91
      %s94 = sphi 0, %s93
      %s108 = sphi 0, %s94
      %s112 = sphi 0, %s112
      %s114 = sphi 0, %s112
      %s115 = sphi 0, %s114
      %s129 = sphi 0, %s115
      %s135 = sphi 0, %s137
      %s138 = sphi 0, %s135
      %s139 = sphi 0, %s138
      %s155 = sphi 0, %s139
      %s161 = sphi 0, %s163
      %s164 = sphi 0, %s161
      %s165 = sphi 0, %s164
      %s181 = sphi 0, %s165
      %s187 = sphi 0, %s189
      %s190 = sphi 0, %s187
      %s191 = sphi 0, %s190
      %s207 = sphi 0, %s191
      %s213 = sphi 0, %s215
      %s216 = sphi 0, %s213
      %s217 = sphi 0, %s216
      %s233 = sphi 0, %s217
      %s239 = sphi 0, %s241
      %s242 = sphi 0, %s239
      %s243 = sphi 0, %s242
      %s259 = sphi 0, %s243
      %s263 = sphi 0, %s263
      %s265 = sphi 0, %s263
      %s266 = sphi 0, %s265
      %s280 = sphi 0, %s266
      %s284 = sphi 0, %s284
      %s286 = sphi 0, %s284
      %s287 = sphi 0, %s286
      %s301 = sphi 0, %s287
      %s305 = sphi 0, %s305
      %s307 = sphi 0, %s305
      %s308 = sphi 0, %s307
      %s322 = sphi 0, %s308
      %s326 = sphi 0, %s326
      %s328 = sphi 0, %s326
      %s329 = sphi 0, %s328
      %s343 = sphi 0, %s329
    $region4: #{tpu_custom_call.1} parent=1 // loop_header_branch
      %23 = sbr.rel (%p21) target = $region8
    $region5: #{tpu_custom_call.1} parent=1 // loop_body
      %s25 = ssub.s32 %s20, 1
      %s26 = ssub.s32 %s20, 2
      %s27 = sadd.s32 %s20, 1
      %s29 = sadd.s32 %s28, 1
      %p32 = scmp.eq.s32.totalorder %s20, 1
      %p33 = scmp.ne.s32.totalorder %s28, %s30
      %p34 = scmp.eq.s32.totalorder %s20, 0
      %p35 = por %p33, %p34
      %p36 = scmp.ne.s32.totalorder %s28, %s30
      %p37 = scmp.eq.s32.totalorder %s25, 1
      %p38 = por %p36, %p37
      %p39 = scmp.ne.s32.totalorder %s30, %s31
      %p40 = scmp.eq.s32.totalorder %s25, 0
      %p41 = por %p39, %p40
      %p42 = scmp.ne.s32.totalorder %s30, %s31
      %p43 = scmp.eq.s32.totalorder %s26, 1
      %p44 = por %p42, %p43
      %p46 = scmp.ne.s32.totalorder %s31, %s45
      %p47 = scmp.eq.s32.totalorder %s26, 0
      %p48 = por %p46, %p47
      %s50 = sadd.s32 %s49, 1
      %p53 = scmp.eq.s32.totalorder %s20, 1
      %p54 = scmp.ne.s32.totalorder %s49, %s51
      %p55 = scmp.eq.s32.totalorder %s20, 0
      %p56 = por %p54, %p55
      %p57 = scmp.ne.s32.totalorder %s49, %s51
      %p58 = scmp.eq.s32.totalorder %s25, 1
      %p59 = por %p57, %p58
      %p60 = scmp.ne.s32.totalorder %s51, %s52
      %p61 = scmp.eq.s32.totalorder %s25, 0
      %p62 = por %p60, %p61
      %p63 = scmp.ne.s32.totalorder %s51, %s52
      %p64 = scmp.eq.s32.totalorder %s26, 1
      %p65 = por %p63, %p64
      %p67 = scmp.ne.s32.totalorder %s52, %s66
      %p68 = scmp.eq.s32.totalorder %s26, 0
      %p69 = por %p67, %p68
      %s71 = sadd.s32 %s70, 1
      %p74 = scmp.eq.s32.totalorder %s20, 1
      %p75 = scmp.ne.s32.totalorder %s70, %s72
      %p76 = scmp.eq.s32.totalorder %s20, 0
      %p77 = por %p75, %p76
      %p78 = scmp.ne.s32.totalorder %s70, %s72
      %p79 = scmp.eq.s32.totalorder %s25, 1
      %p80 = por %p78, %p79
      %p81 = scmp.ne.s32.totalorder %s72, %s73
      %p82 = scmp.eq.s32.totalorder %s25, 0
      %p83 = por %p81, %p82
      %p84 = scmp.ne.s32.totalorder %s72, %s73
      %p85 = scmp.eq.s32.totalorder %s26, 1
      %p86 = por %p84, %p85
      %p88 = scmp.ne.s32.totalorder %s73, %s87
      %p89 = scmp.eq.s32.totalorder %s26, 0
      %p90 = por %p88, %p89
      %s92 = sadd.s32 %s91, 1
      %p95 = scmp.eq.s32.totalorder %s20, 1
      %p96 = scmp.ne.s32.totalorder %s91, %s93
      %p97 = scmp.eq.s32.totalorder %s20, 0
      %p98 = por %p96, %p97
      %p99 = scmp.ne.s32.totalorder %s91, %s93
      %p100 = scmp.eq.s32.totalorder %s25, 1
      %p101 = por %p99, %p100
      %p102 = scmp.ne.s32.totalorder %s93, %s94
      %p103 = scmp.eq.s32.totalorder %s25, 0
      %p104 = por %p102, %p103
      %p105 = scmp.ne.s32.totalorder %s93, %s94
      %p106 = scmp.eq.s32.totalorder %s26, 1
      %p107 = por %p105, %p106
      %p109 = scmp.ne.s32.totalorder %s94, %s108
      %p110 = scmp.eq.s32.totalorder %s26, 0
      %p111 = por %p109, %p110
      %s113 = sadd.s32 %s112, 1
      %p116 = scmp.eq.s32.totalorder %s20, 1
      %p117 = scmp.ne.s32.totalorder %s112, %s114
      %p118 = scmp.eq.s32.totalorder %s20, 0
      %p119 = por %p117, %p118
      %p120 = scmp.ne.s32.totalorder %s112, %s114
      %p121 = scmp.eq.s32.totalorder %s25, 1
      %p122 = por %p120, %p121
      %p123 = scmp.ne.s32.totalorder %s114, %s115
      %p124 = scmp.eq.s32.totalorder %s25, 0
      %p125 = por %p123, %p124
      %p126 = scmp.ne.s32.totalorder %s114, %s115
      %p127 = scmp.eq.s32.totalorder %s26, 1
      %p128 = por %p126, %p127
      %p130 = scmp.ne.s32.totalorder %s115, %s129
      %p131 = scmp.eq.s32.totalorder %s26, 0
      %p132 = por %p130, %p131
      %s133 = ssub.s32 %s20, %s27
      %p134 = scmp.eq.s32.totalorder %s133, 0
      %s136 = sadd.s32 %s135, 1
      %s137 = scalar_select %p134, %s135, %s136
      %p140 = pneg %p134
      %p141 = scmp.eq.s32.totalorder %s20, 1
      %p142 = por %p140, %p141
      %p143 = scmp.ne.s32.totalorder %s135, %s138
      %p144 = scmp.eq.s32.totalorder %s20, 0
      %p145 = por %p143, %p144
      %p146 = scmp.ne.s32.totalorder %s135, %s138
      %p147 = scmp.eq.s32.totalorder %s25, 1
      %p148 = por %p146, %p147
      %p149 = scmp.ne.s32.totalorder %s138, %s139
      %p150 = scmp.eq.s32.totalorder %s25, 0
      %p151 = por %p149, %p150
      %p152 = scmp.ne.s32.totalorder %s138, %s139
      %p153 = scmp.eq.s32.totalorder %s26, 1
      %p154 = por %p152, %p153
      %p156 = scmp.ne.s32.totalorder %s139, %s155
      %p157 = scmp.eq.s32.totalorder %s26, 0
      %p158 = por %p156, %p157
      %s159 = ssub.s32 %s20, %s27
      %p160 = scmp.eq.s32.totalorder %s159, 0
      %s162 = sadd.s32 %s161, 1
      %s163 = scalar_select %p160, %s161, %s162
      %p166 = pneg %p160
      %p167 = scmp.eq.s32.totalorder %s20, 1
      %p168 = por %p166, %p167
      %p169 = scmp.ne.s32.totalorder %s161, %s164
      %p170 = scmp.eq.s32.totalorder %s20, 0
      %p171 = por %p169, %p170
      %p172 = scmp.ne.s32.totalorder %s161, %s164
      %p173 = scmp.eq.s32.totalorder %s25, 1
      %p174 = por %p172, %p173
      %p175 = scmp.ne.s32.totalorder %s164, %s165
      %p176 = scmp.eq.s32.totalorder %s25, 0
      %p177 = por %p175, %p176
      %p178 = scmp.ne.s32.totalorder %s164, %s165
      %p179 = scmp.eq.s32.totalorder %s26, 1
      %p180 = por %p178, %p179
      %p182 = scmp.ne.s32.totalorder %s165, %s181
      %p183 = scmp.eq.s32.totalorder %s26, 0
      %p184 = por %p182, %p183
      %s185 = ssub.s32 %s20, %s27
      %p186 = scmp.eq.s32.totalorder %s185, 0
      %s188 = sadd.s32 %s187, 1
      %s189 = scalar_select %p186, %s187, %s188
      %p192 = pneg %p186
      %p193 = scmp.eq.s32.totalorder %s20, 1
      %p194 = por %p192, %p193
      %p195 = scmp.ne.s32.totalorder %s187, %s190
      %p196 = scmp.eq.s32.totalorder %s20, 0
      %p197 = por %p195, %p196
      %p198 = scmp.ne.s32.totalorder %s187, %s190
      %p199 = scmp.eq.s32.totalorder %s25, 1
      %p200 = por %p198, %p199
      %p201 = scmp.ne.s32.totalorder %s190, %s191
      %p202 = scmp.eq.s32.totalorder %s25, 0
      %p203 = por %p201, %p202
      %p204 = scmp.ne.s32.totalorder %s190, %s191
      %p205 = scmp.eq.s32.totalorder %s26, 1
      %p206 = por %p204, %p205
      %p208 = scmp.ne.s32.totalorder %s191, %s207
      %p209 = scmp.eq.s32.totalorder %s26, 0
      %p210 = por %p208, %p209
      %s211 = ssub.s32 %s20, %s27
      %p212 = scmp.eq.s32.totalorder %s211, 0
      %s214 = sadd.s32 %s213, 1
      %s215 = scalar_select %p212, %s213, %s214
      %p218 = pneg %p212
      %p219 = scmp.eq.s32.totalorder %s20, 1
      %p220 = por %p218, %p219
      %p221 = scmp.ne.s32.totalorder %s213, %s216
      %p222 = scmp.eq.s32.totalorder %s20, 0
      %p223 = por %p221, %p222
      %p224 = scmp.ne.s32.totalorder %s213, %s216
      %p225 = scmp.eq.s32.totalorder %s25, 1
      %p226 = por %p224, %p225
      %p227 = scmp.ne.s32.totalorder %s216, %s217
      %p228 = scmp.eq.s32.totalorder %s25, 0
      %p229 = por %p227, %p228
      %p230 = scmp.ne.s32.totalorder %s216, %s217
      %p231 = scmp.eq.s32.totalorder %s26, 1
      %p232 = por %p230, %p231
      %p234 = scmp.ne.s32.totalorder %s217, %s233
      %p235 = scmp.eq.s32.totalorder %s26, 0
      %p236 = por %p234, %p235
      %s237 = ssub.s32 %s20, %s27
      %p238 = scmp.eq.s32.totalorder %s237, 0
      %s240 = sadd.s32 %s239, 1
      %s241 = scalar_select %p238, %s239, %s240
      %p244 = pneg %p238
      %p245 = scmp.eq.s32.totalorder %s20, 1
      %p246 = por %p244, %p245
      %p247 = scmp.ne.s32.totalorder %s239, %s242
      %p248 = scmp.eq.s32.totalorder %s20, 0
      %p249 = por %p247, %p248
      %p250 = scmp.ne.s32.totalorder %s239, %s242
      %p251 = scmp.eq.s32.totalorder %s25, 1
      %p252 = por %p250, %p251
      %p253 = scmp.ne.s32.totalorder %s242, %s243
      %p254 = scmp.eq.s32.totalorder %s25, 0
      %p255 = por %p253, %p254
      %p256 = scmp.ne.s32.totalorder %s242, %s243
      %p257 = scmp.eq.s32.totalorder %s26, 1
      %p258 = por %p256, %p257
      %p260 = scmp.ne.s32.totalorder %s243, %s259
      %p261 = scmp.eq.s32.totalorder %s26, 0
      %p262 = por %p260, %p261
      %s264 = sadd.s32 %s263, 1
      %p267 = scmp.eq.s32.totalorder %s20, 1
      %p268 = scmp.ne.s32.totalorder %s263, %s265
      %p269 = scmp.eq.s32.totalorder %s20, 0
      %p270 = por %p268, %p269
      %p271 = scmp.ne.s32.totalorder %s263, %s265
      %p272 = scmp.eq.s32.totalorder %s25, 1
      %p273 = por %p271, %p272
      %p274 = scmp.ne.s32.totalorder %s265, %s266
      %p275 = scmp.eq.s32.totalorder %s25, 0
      %p276 = por %p274, %p275
      %p277 = scmp.ne.s32.totalorder %s265, %s266
      %p278 = scmp.eq.s32.totalorder %s26, 1
      %p279 = por %p277, %p278
      %p281 = scmp.ne.s32.totalorder %s266, %s280
      %p282 = scmp.eq.s32.totalorder %s26, 0
      %p283 = por %p281, %p282
      %s285 = sadd.s32 %s284, 1
      %p288 = scmp.eq.s32.totalorder %s20, 1
      %p289 = scmp.ne.s32.totalorder %s284, %s286
      %p290 = scmp.eq.s32.totalorder %s20, 0
      %p291 = por %p289, %p290
      %p292 = scmp.ne.s32.totalorder %s284, %s286
      %p293 = scmp.eq.s32.totalorder %s25, 1
      %p294 = por %p292, %p293
      %p295 = scmp.ne.s32.totalorder %s286, %s287
      %p296 = scmp.eq.s32.totalorder %s25, 0
      %p297 = por %p295, %p296
      %p298 = scmp.ne.s32.totalorder %s286, %s287
      %p299 = scmp.eq.s32.totalorder %s26, 1
      %p300 = por %p298, %p299
      %p302 = scmp.ne.s32.totalorder %s287, %s301
      %p303 = scmp.eq.s32.totalorder %s26, 0
      %p304 = por %p302, %p303
      %s306 = sadd.s32 %s305, 1
      %p309 = scmp.eq.s32.totalorder %s20, 1
      %p310 = scmp.ne.s32.totalorder %s305, %s307
      %p311 = scmp.eq.s32.totalorder %s20, 0
      %p312 = por %p310, %p311
      %p313 = scmp.ne.s32.totalorder %s305, %s307
      %p314 = scmp.eq.s32.totalorder %s25, 1
      %p315 = por %p313, %p314
      %p316 = scmp.ne.s32.totalorder %s307, %s308
      %p317 = scmp.eq.s32.totalorder %s25, 0
      %p318 = por %p316, %p317
      %p319 = scmp.ne.s32.totalorder %s307, %s308
      %p320 = scmp.eq.s32.totalorder %s26, 1
      %p321 = por %p319, %p320
      %p323 = scmp.ne.s32.totalorder %s308, %s322
      %p324 = scmp.eq.s32.totalorder %s26, 0
      %p325 = por %p323, %p324
      %s327 = sadd.s32 %s326, 1
      %p330 = scmp.eq.s32.totalorder %s20, 1
      %p331 = scmp.ne.s32.totalorder %s326, %s328
      %p332 = scmp.eq.s32.totalorder %s20, 0
      %p333 = por %p331, %p332
      %p334 = scmp.ne.s32.totalorder %s326, %s328
      %p335 = scmp.eq.s32.totalorder %s25, 1
      %p336 = por %p334, %p335
      %p337 = scmp.ne.s32.totalorder %s328, %s329
      %p338 = scmp.eq.s32.totalorder %s25, 0
      %p339 = por %p337, %p338
      %p340 = scmp.ne.s32.totalorder %s328, %s329
      %p341 = scmp.eq.s32.totalorder %s26, 1
      %p342 = por %p340, %p341
      %p344 = scmp.ne.s32.totalorder %s329, %s343
      %p345 = scmp.eq.s32.totalorder %s26, 0
      %p346 = por %p344, %p345
      %p347 = scmp.le.s32.totalorder 1, %s20
      %p348 = scmp.lt.s32.totalorder %s20, 3
      %p349 = pnand %p347, %p348
      %p350 = pneg %p349
      // Predicated region
      $region9: #{tpu_custom_call.1} parent=5 // pred_check
        _
      $region10: #{tpu_custom_call.1} parent=5 // pred_check_branch
        %352 = sbr.rel (%p349) target = $region12
      $region11: #{tpu_custom_call.1} parent=5 // pred_region
        %s353 = ssub.s32 %s20, 1
        // Predicated region
        $region13: #{tpu_custom_call.1} parent=11 // pred_check
          %p354 = pneg %p41
        $region14: #{tpu_custom_call.1} parent=11 // pred_check_branch
          %356 = sbr.rel (%p354) target = $region16
        $region15: #{tpu_custom_call.1} parent=11 // pred_region
          _
        $region16: #{tpu_custom_call.1} parent=11 // pred_fallthru
          _
        // Predicated region
        $region17: #{tpu_custom_call.1} parent=11 // pred_check
          %p357 = pneg %p62
        $region18: #{tpu_custom_call.1} parent=11 // pred_check_branch
          %359 = sbr.rel (%p357) target = $region20
        $region19: #{tpu_custom_call.1} parent=11 // pred_region
          _
        $region20: #{tpu_custom_call.1} parent=11 // pred_fallthru
          _
        // Predicated region
        $region21: #{tpu_custom_call.1} parent=11 // pred_check
          %p360 = pneg %p83
        $region22: #{tpu_custom_call.1} parent=11 // pred_check_branch
          %362 = sbr.rel (%p360) target = $region24
        $region23: #{tpu_custom_call.1} parent=11 // pred_region
          _
        $region24: #{tpu_custom_call.1} parent=11 // pred_fallthru
          _
        // Predicated region
        $region25: #{tpu_custom_call.1} parent=11 // pred_check
          %p363 = pneg %p104
        $region26: #{tpu_custom_call.1} parent=11 // pred_check_branch
          %365 = sbr.rel (%p363) target = $region28
        $region27: #{tpu_custom_call.1} parent=11 // pred_region
          _
        $region28: #{tpu_custom_call.1} parent=11 // pred_fallthru
          _
        // Predicated region
        $region29: #{tpu_custom_call.1} parent=11 // pred_check
          %p366 = pneg %p125
        $region30: #{tpu_custom_call.1} parent=11 // pred_check_branch
          %368 = sbr.rel (%p366) target = $region32
        $region31: #{tpu_custom_call.1} parent=11 // pred_region
          _
        $region32: #{tpu_custom_call.1} parent=11 // pred_fallthru
          _
        // Predicated region
        $region33: #{tpu_custom_call.1} parent=11 // pred_check
          %p369 = pneg %p276
        $region34: #{tpu_custom_call.1} parent=11 // pred_check_branch
          %371 = sbr.rel (%p369) target = $region36
        $region35: #{tpu_custom_call.1} parent=11 // pred_region
          _
        $region36: #{tpu_custom_call.1} parent=11 // pred_fallthru
          _
        // Predicated region
        $region37: #{tpu_custom_call.1} parent=11 // pred_check
          %p372 = pneg %p297
        $region38: #{tpu_custom_call.1} parent=11 // pred_check_branch
          %374 = sbr.rel (%p372) target = $region40
        $region39: #{tpu_custom_call.1} parent=11 // pred_region
          _
        $region40: #{tpu_custom_call.1} parent=11 // pred_fallthru
          _
        // Predicated region
        $region41: #{tpu_custom_call.1} parent=11 // pred_check
          %p375 = pneg %p318
        $region42: #{tpu_custom_call.1} parent=11 // pred_check_branch
          %377 = sbr.rel (%p375) target = $region44
        $region43: #{tpu_custom_call.1} parent=11 // pred_region
          _
        $region44: #{tpu_custom_call.1} parent=11 // pred_fallthru
          _
      $region12: #{tpu_custom_call.1} parent=5 // pred_fallthru
        _
      %p378 = scmp.lt.s32.totalorder %s20, 2
      // Predicated region
      $region45: #{tpu_custom_call.1} parent=5 // pred_check
        %p379 = pneg %p378
      $region46: #{tpu_custom_call.1} parent=5 // pred_check_branch
        %381 = sbr.rel (%p379) target = $region48
      $region47: #{tpu_custom_call.1} parent=5 // pred_region
        // Predicated region
        $region49: #{tpu_custom_call.1} parent=47 // pred_check
          %p382 = pneg %p145
        $region50: #{tpu_custom_call.1} parent=47 // pred_check_branch
          %384 = sbr.rel (%p382) target = $region52
        $region51: #{tpu_custom_call.1} parent=47 // pred_region
          %p385 = scmp.lt.s32.totalorder %s20, 1
          %s386 = scalar_select %p385, %s20, 1
          %s387 = smul.addr %s386, 4
          %s388 = smul.addr %s387, 4
          %s389 = scalar_lea.vmem %s5, %s388
        $region52: #{tpu_custom_call.1} parent=47 // pred_fallthru
          _
        // Predicated region
        $region53: #{tpu_custom_call.1} parent=47 // pred_check
          %p390 = pneg %p171
        $region54: #{tpu_custom_call.1} parent=47 // pred_check_branch
          %392 = sbr.rel (%p390) target = $region56
        $region55: #{tpu_custom_call.1} parent=47 // pred_region
          %p393 = scmp.lt.s32.totalorder %s20, 1
          %s394 = scalar_select %p393, %s20, 1
          %s395 = smul.addr %s394, 4
          %s396 = smul.addr %s395, 4
          %s397 = scalar_lea.vmem %s6, %s396
        $region56: #{tpu_custom_call.1} parent=47 // pred_fallthru
          _
        // Predicated region
        $region57: #{tpu_custom_call.1} parent=47 // pred_check
          %p398 = pneg %p197
        $region58: #{tpu_custom_call.1} parent=47 // pred_check_branch
          %400 = sbr.rel (%p398) target = $region60
        $region59: #{tpu_custom_call.1} parent=47 // pred_region
          %p401 = scmp.lt.s32.totalorder %s20, 1
          %s402 = scalar_select %p401, %s20, 1
          %s403 = smul.addr %s402, 4
          %s404 = smul.addr %s403, 4
          %s405 = scalar_lea.vmem %s7, %s404
        $region60: #{tpu_custom_call.1} parent=47 // pred_fallthru
          _
        // Predicated region
        $region61: #{tpu_custom_call.1} parent=47 // pred_check
          %p406 = pneg %p223
        $region62: #{tpu_custom_call.1} parent=47 // pred_check_branch
          %408 = sbr.rel (%p406) target = $region64
        $region63: #{tpu_custom_call.1} parent=47 // pred_region
          %p409 = scmp.lt.s32.totalorder %s20, 1
          %s410 = scalar_select %p409, %s20, 1
          %s411 = smul.addr %s410, 16
          %s412 = smul.addr %s411, 4
          %s413 = scalar_lea.vmem %s8, %s412
        $region64: #{tpu_custom_call.1} parent=47 // pred_fallthru
          _
        // Predicated region
        $region65: #{tpu_custom_call.1} parent=47 // pred_check
          %p414 = pneg %p249
        $region66: #{tpu_custom_call.1} parent=47 // pred_check_branch
          %416 = sbr.rel (%p414) target = $region68
        $region67: #{tpu_custom_call.1} parent=47 // pred_region
          %p417 = scmp.lt.s32.totalorder %s20, 1
          %s418 = scalar_select %p417, %s20, 1
          %s419 = smul.addr %s418, 8
          %s420 = scalar_lea.vmem %s9, %s419
        $region68: #{tpu_custom_call.1} parent=47 // pred_fallthru
          _
      $region48: #{tpu_custom_call.1} parent=5 // pred_fallthru
        _
      %p421 = scmp.le.s32.totalorder 1, %s20
      %p422 = scmp.lt.s32.totalorder %s20, 3
      %p423 = pnand %p421, %p422
      %p424 = pneg %p423
      // Predicated region
      $region69: #{tpu_custom_call.1} parent=5 // pred_check
        _
      $region70: #{tpu_custom_call.1} parent=5 // pred_check_branch
        %426 = sbr.rel (%p423) target = $region72
      $region71: #{tpu_custom_call.1} parent=5 // pred_region
        %s427 = ssub.s32 %s20, 1
        %p428 = pneg %p41
        %p429 = pneg %p38
        %p430 = pneg %p62
        %p431 = pneg %p59
        %p432 = pneg %p83
        %p433 = pneg %p80
        %p434 = pneg %p104
        %p435 = pneg %p101
        %p436 = pneg %p125
        %p437 = pneg %p122
        %p438 = scmp.lt.s32.totalorder %s25, 1
        %s439 = scalar_select %p438, %s25, 1
        %s440 = smul.addr %s439, 4
        %s441 = smul.addr %s440, 4
        %s442 = scalar_lea.vmem %s5, %s441
        %p443 = pneg %p151
        %p444 = pneg %p148
        %p445 = scmp.lt.s32.totalorder %s25, 1
        %s446 = scalar_select %p445, %s25, 1
        %s447 = smul.addr %s446, 4
        %s448 = smul.addr %s447, 4
        %s449 = scalar_lea.vmem %s6, %s448
        %p450 = pneg %p177
        %p451 = pneg %p174
        %p452 = scmp.lt.s32.totalorder %s25, 1
        %s453 = scalar_select %p452, %s25, 1
        %s454 = smul.addr %s453, 4
        %s455 = smul.addr %s454, 4
        %s456 = scalar_lea.vmem %s7, %s455
        %p457 = pneg %p203
        %p458 = pneg %p200
        %p459 = scmp.lt.s32.totalorder %s25, 1
        %s460 = scalar_select %p459, %s25, 1
        %s461 = smul.addr %s460, 16
        %s462 = smul.addr %s461, 4
        %s463 = scalar_lea.vmem %s8, %s462
        %p464 = pneg %p229
        %p465 = pneg %p226
        %p466 = scmp.lt.s32.totalorder %s25, 1
        %s467 = scalar_select %p466, %s25, 1
        %s468 = smul.addr %s467, 8
        %s469 = scalar_lea.vmem %s9, %s468
        %p470 = pneg %p255
        %p471 = pneg %p252
        %p472 = pneg %p276
        %p473 = pneg %p273
        %p474 = pneg %p297
        %p475 = pneg %p294
        %p476 = pneg %p318
        %p477 = pneg %p315
        %p478 = pneg %p339
        %p479 = pneg %p336
        %p480 = scmp.lt.s32.totalorder %s25, 1
        %s481 = scalar_select %p480, %s25, 1
        %s482 = smul.addr %s481, 4
        %s483 = smul.addr %s482, 4
        %s484 = scalar_lea.vmem %s5, %s483
        %p485 = scmp.lt.s32.totalorder %s25, 1
        %s486 = scalar_select %p485, %s25, 1
        %s487 = smul.addr %s486, 4
        %s488 = smul.addr %s487, 4
        %s489 = scalar_lea.vmem %s6, %s488
        %p490 = scmp.lt.s32.totalorder %s25, 1
        %s491 = scalar_select %p490, %s25, 1
        %s492 = smul.addr %s491, 4
        %s493 = smul.addr %s492, 4
        %s494 = scalar_lea.vmem %s7, %s493
        %p495 = scmp.lt.s32.totalorder %s25, 1
        %s496 = scalar_select %p495, %s25, 1
        %s497 = smul.addr %s496, 16
        %s498 = smul.addr %s497, 4
        %s499 = scalar_lea.vmem %s8, %s498
        %p500 = scmp.lt.s32.totalorder %s25, 1
        %s501 = scalar_select %p500, %s25, 1
        %s502 = smul.addr %s501, 8
        %s503 = scalar_lea.vmem %s9, %s502
        %p505 = scmp.eq.s32.totalorder %s25, 0
        // Predicated region
        $region73: #{tpu_custom_call.1} parent=71 // pred_check
          %p506 = pneg %p505
        $region74: #{tpu_custom_call.1} parent=71 // pred_check_branch
          %508 = sbr.rel (%p506) target = $region76
        $region75: #{tpu_custom_call.1} parent=71 // pred_region
          %v509 = vld [vmem:[%s0] sm:$0xff]
          %v510 = vld [vmem:[%s0 + $0x8] sm:$0xff]
          %v511 = vlaneseq
          %v512 = vand.u32 %v511, 127
          %513 = vset.pattern.permute.xlu0 0
          %514 = vperm.xlu0 %513, %v509
          %v515 = vpop.permute.xlu0 %514
          %516 = vset.pattern.permute.xlu0 0
          %517 = vperm.xlu0 %516, %v510
          %v518 = vpop.permute.xlu0 %517
          %vm519 = vcmp.eq.s32.totalorder %v515, %v512
          %vm520 = vcmp.eq.s32.totalorder %v518, %v512
          %v521 = vsel %vm519, 1.0, 0.0
          %v522 = vsel %vm520, 1.0, 0.0
          %v523 = vpack.c.bf16 %v522, %v521
          %v524 = vld [vmem:[%s2] sm:$0xf]
          %v525 = vld [vmem:[%s2 + $0x4] sm:$0xf]
          %v526 = vld [vmem:[%s2 + $0x8] sm:$0xf]
          %v527 = vld [vmem:[%s2 + $0xc] sm:$0xf]
          %v528 = vld [vmem:[%s2 + $0x10] sm:$0xf]
          %v529 = vld [vmem:[%s2 + $0x14] sm:$0xf]
          %v530 = vld [vmem:[%s2 + $0x18] sm:$0xf]
          %v531 = vld [vmem:[%s2 + $0x1c] sm:$0xf]
          %v540 = vunpack.c.l.b16 %v524
          %v541 = vunpack.c.l.b16 %v525
          %v542 = vunpack.c.l.b16 %v526
          %v543 = vunpack.c.l.b16 %v527
          %v544 = vunpack.c.l.b16 %v528
          %v545 = vunpack.c.l.b16 %v529
          %v546 = vunpack.c.l.b16 %v530
          %v547 = vunpack.c.l.b16 %v531
          %v548 = vpack.c.b16 %v541, %v540
          %v549 = vpack.c.b16 %v543, %v542
          %v550 = vpack.c.b16 %v545, %v544
          %v551 = vpack.c.b16 %v547, %v546
          %vm556 = vcmask 523264
          %v558 = vsel %vm556, %v523, 0
          %560 = vmatprep.subr.bf16.mxu0 0
          %561 = vmatpush1.bf16.msra.mxu0 %v548
          %562 = vmatprep.subr.bf16.mxu0 0
          %563 = vmatpush1.bf16.msra.mxu0 %v549
          %564 = vmatprep.subr.bf16.mxu0 0
          %565 = vmatpush1.bf16.msra.mxu0 %v550
          %566 = vmatprep.subr.bf16.mxu0 0
          %567 = vmatpush1.bf16.msra.mxu0 %v551
          %568 = vmatprep.subr.bf16.mxu0 0
          %569 = vmatpush1.bf16.msra.mxu0 0
          %570 = vmatprep.subr.bf16.mxu0 0
          %571 = vmatpush1.bf16.msra.mxu0 0
          %572 = vmatprep.subr.bf16.mxu0 0
          %573 = vmatpush1.bf16.msra.mxu0 0
          %574 = vmatprep.subr.bf16.mxu0 0
          %575 = vmatpush1.bf16.msra.mxu0 0
          %576 = vmatprep.subr.bf16.mxu0 0
          %577 = vmatpush1.bf16.msra.mxu0 0
          %578 = vmatprep.subr.bf16.mxu0 0
          %579 = vmatpush1.bf16.msra.mxu0 0
          %580 = vmatprep.subr.bf16.mxu0 0
          %581 = vmatpush1.bf16.msra.mxu0 0
          %582 = vmatprep.subr.bf16.mxu0 0
          %583 = vmatpush1.bf16.msra.mxu0 0
          %584 = vmatprep.subr.bf16.mxu0 0
          %585 = vmatpush1.bf16.msra.mxu0 0
          %586 = vmatprep.subr.bf16.mxu0 0
          %587 = vmatpush1.bf16.msra.mxu0 0
          %588 = vmatprep.subr.bf16.mxu0 0
          %589 = vmatpush1.bf16.msra.mxu0 0
          %590 = vmatprep.subr.bf16.mxu0 0
          %591 = vmatpush1.bf16.msra.mxu0 0
          %592 = vmatprep.mubr.bf16.mxu0 0
          %593 = vmatmul.mubr.bf16.gmra.mrb[0].mxu0 %v558
          %v594 = vpop.f32.mrb[0].mxu0
          %v595 = vadd.f32 0.0, %v594
          %v596 = vpop.f32.mrb[0].mxu0
          %v597 = vpop.f32.mrb[0].mxu0
          %v598 = vadd.f32 0.0, %v597
          %v599 = vpop.f32.mrb[0].mxu0
          %600 = vdwg.mxu0
          %v601 = vld [vmem:[%s3] sm:$0xff]
          %v602 = vadd.f32 %v595, %v601
          %v603 = vadd.f32 %v598, %v601
          %vm604 = vcmask 261120
          %605 = vst.msk [vmem:[#allocation2] sm:$0xff] %vm604, %v602
          %606 = vst.msk [vmem:[#allocation2 + $0x8] sm:$0xff] %vm604, %v603
        $region76: #{tpu_custom_call.1} parent=71 // pred_fallthru
          _
        %v607 = vld [vmem:[%s503] sm:$0xff]
        %v608 = vld [vmem:[#allocation2] sm:$0xff]
        %v609 = vld [vmem:[#allocation2 + $0x8] sm:$0xff]
        %vm610 = vcmask 261120
        %v611 = vsel %vm610, %v608, 0.0
        %612 = vadd.xlane.f32.xlu0 %v611
        %v613 = vpop.xlane.xlu0 %612
        %v614 = vsel %vm610, %v609, 0.0
        %615 = vadd.xlane.f32.xlu0 %v614
        %v616 = vpop.xlane.xlu0 %615
        %v617 = vrcp.pop 32.0
        %v618 = vmul.f32 %v613, %v617
        %v619 = vmul.f32 %v616, %v617
        %v620 = vsub.f32 %v608, %v618
        %v621 = vsub.f32 %v609, %v619
        %v622 = vmul.f32 %v620, %v620
        %v623 = vmul.f32 %v621, %v621
        %v624 = vsel %vm610, %v622, 0.0
        %625 = vadd.xlane.f32.xlu0 %v624
        %v626 = vpop.xlane.xlu0 %625
        %v627 = vsel %vm610, %v623, 0.0
        %628 = vadd.xlane.f32.xlu0 %v627
        %v629 = vpop.xlane.xlu0 %628
        %v630 = vmul.f32 %v626, %v617
        %v631 = vmul.f32 %v629, %v617
        %v632 = vadd.f32 %v630, 1e-05
        %v633 = vadd.f32 %v631, 1e-05
        %v634 = vrsqrt.pop %v632
        %v635 = vrsqrt.pop %v633
        %v636 = vmul.f32 %v620, %v634
        %v637 = vmul.f32 %v621, %v635
        %v638 = vlaneseq
        %v639 = vshrl.u32 %v638, 7
        %v640 = vsub.s32 0, %v639
        %v641 = vrot.slane %v607, %v640
        %v642 = vmul.f32 %v636, %v641
        %v643 = vmul.f32 %v637, %v641
        %v644 = vlaneseq
        %v645 = vshrl.u32 %v644, 7
        %v646 = vsub.s32 1, %v645
        %v647 = vrot.slane %v607, %v646
        %v648 = vadd.f32 %v642, %v647
        %v649 = vadd.f32 %v643, %v647
        %v650 = vpack.c.bf16 %v649, %v648
        %v651 = vld [vmem:[%s484] sm:$0xf]
        %v652 = vld [vmem:[%s484 + $0x4] sm:$0xf]
        %v653 = vld [vmem:[%s484 + $0x8] sm:$0xf]
        %v654 = vld [vmem:[%s484 + $0xc] sm:$0xf]
        %v655 = vlaneseq
        %v656 = vshrl.u32 %v655, 7
        %v657 = vsub.s32 6, %v656
        %v658 = vrot.slane %v607, %v657
        %v663 = vunpack.c.l.b16 %v651
        %v664 = vunpack.c.l.b16 %v652
        %v665 = vunpack.c.l.b16 %v653
        %v666 = vunpack.c.l.b16 %v654
        %v667 = vpack.c.b16 %v664, %v663
        %v668 = vpack.c.b16 %v666, %v665
        %v672 = vsel %vm610, %v650, 0
        %674 = vmatprep.subr.bf16.mxu0 0
        %675 = vmatpush1.bf16.msra.mxu0 %v667
        %676 = vmatprep.subr.bf16.mxu0 0
        %677 = vmatpush1.bf16.msra.mxu0 %v668
        %678 = vmatprep.subr.bf16.mxu0 0
        %679 = vmatpush1.bf16.msra.mxu0 0
        %680 = vmatprep.subr.bf16.mxu0 0
        %681 = vmatpush1.bf16.msra.mxu0 0
        %682 = vmatprep.subr.bf16.mxu0 0
        %683 = vmatpush1.bf16.msra.mxu0 0
        %684 = vmatprep.subr.bf16.mxu0 0
        %685 = vmatpush1.bf16.msra.mxu0 0
        %686 = vmatprep.subr.bf16.mxu0 0
        %687 = vmatpush1.bf16.msra.mxu0 0
        %688 = vmatprep.subr.bf16.mxu0 0
        %689 = vmatpush1.bf16.msra.mxu0 0
        %690 = vmatprep.subr.bf16.mxu0 0
        %691 = vmatpush1.bf16.msra.mxu0 0
        %692 = vmatprep.subr.bf16.mxu0 0
        %693 = vmatpush1.bf16.msra.mxu0 0
        %694 = vmatprep.subr.bf16.mxu0 0
        %695 = vmatpush1.bf16.msra.mxu0 0
        %696 = vmatprep.subr.bf16.mxu0 0
        %697 = vmatpush1.bf16.msra.mxu0 0
        %698 = vmatprep.subr.bf16.mxu0 0
        %699 = vmatpush1.bf16.msra.mxu0 0
        %700 = vmatprep.subr.bf16.mxu0 0
        %701 = vmatpush1.bf16.msra.mxu0 0
        %702 = vmatprep.subr.bf16.mxu0 0
        %703 = vmatpush1.bf16.msra.mxu0 0
        %704 = vmatprep.subr.bf16.mxu0 0
        %705 = vmatpush1.bf16.msra.mxu0 0
        %706 = vmatprep.mubr.bf16.mxu0 0
        %707 = vmatmul.mubr.bf16.gmra.mrb[0].mxu0 %v672
        %v708 = vpop.f32.mrb[0].mxu0
        %v709 = vadd.f32 %v658, %v708
        %v710 = vpop.f32.mrb[0].mxu0
        %v711 = vpop.f32.mrb[0].mxu0
        %v712 = vadd.f32 %v658, %v711
        %v713 = vpop.f32.mrb[0].mxu0
        %714 = vdwg.mxu0
        %717 = vrot.lane.b32.xlu0 %v709, 120
        %v718 = vpop.permute.xlu0 %717
        %719 = vrot.lane.b32.xlu0 %v712, 120
        %v720 = vpop.permute.xlu0 %719
        %723 = vrot.lane.b32.xlu0 %v709, 112
        %v724 = vpop.permute.xlu0 %723
        %725 = vrot.lane.b32.xlu0 %v712, 112
        %v726 = vpop.permute.xlu0 %725
        %729 = vrot.lane.b32.xlu0 %v709, 104
        %v730 = vpop.permute.xlu0 %729
        %731 = vrot.lane.b32.xlu0 %v712, 104
        %v732 = vpop.permute.xlu0 %731
        %v735 = vpack.c.bf16 %v712, %v709
        %v736 = vpack.c.bf16 %v720, %v718
        %v737 = vpack.c.bf16 %v726, %v724
        %v738 = vpack.c.bf16 %v732, %v730
        %740 = vrot.lane.b32.xlu0 %v735, 96
        %v741 = vpop.permute.xlu0 %740
        %vm742 = vcmask 64512
        %v744 = vsel %vm742, %v735, 0
        %v747 = vsel %vm742, %v741, 0
        %749 = vmatprep.subr.bf16.mxu0 0
        %750 = vmatpush1.bf16.xpose.msra.mxu0 %v747
        %751 = vmatprep.subr.bf16.mxu0 0
        %752 = vmatpush1.bf16.xpose.msra.mxu0 0
        %753 = vmatprep.subr.bf16.mxu0 0
        %754 = vmatpush1.bf16.xpose.msra.mxu0 0
        %755 = vmatprep.subr.bf16.mxu0 0
        %756 = vmatpush1.bf16.xpose.msra.mxu0 0
        %757 = vmatprep.subr.bf16.mxu0 0
        %758 = vmatpush1.bf16.xpose.msra.mxu0 0
        %759 = vmatprep.subr.bf16.mxu0 0
        %760 = vmatpush1.bf16.xpose.msra.mxu0 0
        %761 = vmatprep.subr.bf16.mxu0 0
        %762 = vmatpush1.bf16.xpose.msra.mxu0 0
        %763 = vmatprep.subr.bf16.mxu0 0
        %764 = vmatpush1.bf16.xpose.msra.mxu0 0
        %765 = vmatprep.subr.bf16.mxu0 0
        %766 = vmatpush1.bf16.xpose.msra.mxu0 0
        %767 = vmatprep.subr.bf16.mxu0 0
        %768 = vmatpush1.bf16.xpose.msra.mxu0 0
        %769 = vmatprep.subr.bf16.mxu0 0
        %770 = vmatpush1.bf16.xpose.msra.mxu0 0
        %771 = vmatprep.subr.bf16.mxu0 0
        %772 = vmatpush1.bf16.xpose.msra.mxu0 0
        %773 = vmatprep.subr.bf16.mxu0 0
        %774 = vmatpush1.bf16.xpose.msra.mxu0 0
        %775 = vmatprep.subr.bf16.mxu0 0
        %776 = vmatpush1.bf16.xpose.msra.mxu0 0
        %777 = vmatprep.subr.bf16.mxu0 0
        %778 = vmatpush1.bf16.xpose.msra.mxu0 0
        %779 = vmatprep.subr.bf16.mxu0 0
        %780 = vmatpush1.bf16.xpose.msra.mxu0 0
        %781 = vmatprep.mubr.bf16.mxu0 0
        %782 = vmatmul.mubr.bf16.gmra.mrb[0].mxu0 %v744
        %v783 = vpop.f32.mrb[0].mxu0
        %v784 = vadd.f32 0.0, %v783
        %v785 = vpop.f32.mrb[0].mxu0
        %v786 = vpop.f32.mrb[0].mxu0
        %v787 = vadd.f32 0.0, %v786
        %v788 = vpop.f32.mrb[0].mxu0
        %789 = vdwg.mxu0
        %791 = vrot.lane.b32.xlu0 %v736, 96
        %v792 = vpop.permute.xlu0 %791
        %v794 = vsel %vm742, %v736, 0
        %v797 = vsel %vm742, %v792, 0
        %799 = vmatprep.subr.bf16.mxu0 0
        %800 = vmatpush1.bf16.xpose.msra.mxu0 %v797
        %801 = vmatprep.subr.bf16.mxu0 0
        %802 = vmatpush1.bf16.xpose.msra.mxu0 0
        %803 = vmatprep.subr.bf16.mxu0 0
        %804 = vmatpush1.bf16.xpose.msra.mxu0 0
        %805 = vmatprep.subr.bf16.mxu0 0
        %806 = vmatpush1.bf16.xpose.msra.mxu0 0
        %807 = vmatprep.subr.bf16.mxu0 0
        %808 = vmatpush1.bf16.xpose.msra.mxu0 0
        %809 = vmatprep.subr.bf16.mxu0 0
        %810 = vmatpush1.bf16.xpose.msra.mxu0 0
        %811 = vmatprep.subr.bf16.mxu0 0
        %812 = vmatpush1.bf16.xpose.msra.mxu0 0
        %813 = vmatprep.subr.bf16.mxu0 0
        %814 = vmatpush1.bf16.xpose.msra.mxu0 0
        %815 = vmatprep.subr.bf16.mxu0 0
        %816 = vmatpush1.bf16.xpose.msra.mxu0 0
        %817 = vmatprep.subr.bf16.mxu0 0
        %818 = vmatpush1.bf16.xpose.msra.mxu0 0
        %819 = vmatprep.subr.bf16.mxu0 0
        %820 = vmatpush1.bf16.xpose.msra.mxu0 0
        %821 = vmatprep.subr.bf16.mxu0 0
        %822 = vmatpush1.bf16.xpose.msra.mxu0 0
        %823 = vmatprep.subr.bf16.mxu0 0
        %824 = vmatpush1.bf16.xpose.msra.mxu0 0
        %825 = vmatprep.subr.bf16.mxu0 0
        %826 = vmatpush1.bf16.xpose.msra.mxu0 0
        %827 = vmatprep.subr.bf16.mxu0 0
        %828 = vmatpush1.bf16.xpose.msra.mxu0 0
        %829 = vmatprep.subr.bf16.mxu0 0
        %830 = vmatpush1.bf16.xpose.msra.mxu0 0
        %831 = vmatprep.mubr.bf16.mxu0 0
        %832 = vmatmul.mubr.bf16.gmra.mrb[0].mxu0 %v794
        %v833 = vpop.f32.mrb[0].mxu0
        %v834 = vadd.f32 0.0, %v833
        %v835 = vpop.f32.mrb[0].mxu0
        %v836 = vpop.f32.mrb[0].mxu0
        %v837 = vadd.f32 0.0, %v836
        %v838 = vpop.f32.mrb[0].mxu0
        %839 = vdwg.mxu0
        %841 = vrot.lane.b32.xlu0 %v737, 96
        %v842 = vpop.permute.xlu0 %841
        %v844 = vsel %vm742, %v737, 0
        %v847 = vsel %vm742, %v842, 0
        %849 = vmatprep.subr.bf16.mxu0 0
        %850 = vmatpush1.bf16.xpose.msra.mxu0 %v847
        %851 = vmatprep.subr.bf16.mxu0 0
        %852 = vmatpush1.bf16.xpose.msra.mxu0 0
        %853 = vmatprep.subr.bf16.mxu0 0
        %854 = vmatpush1.bf16.xpose.msra.mxu0 0
        %855 = vmatprep.subr.bf16.mxu0 0
        %856 = vmatpush1.bf16.xpose.msra.mxu0 0
        %857 = vmatprep.subr.bf16.mxu0 0
        %858 = vmatpush1.bf16.xpose.msra.mxu0 0
        %859 = vmatprep.subr.bf16.mxu0 0
        %860 = vmatpush1.bf16.xpose.msra.mxu0 0
        %861 = vmatprep.subr.bf16.mxu0 0
        %862 = vmatpush1.bf16.xpose.msra.mxu0 0
        %863 = vmatprep.subr.bf16.mxu0 0
        %864 = vmatpush1.bf16.xpose.msra.mxu0 0
        %865 = vmatprep.subr.bf16.mxu0 0
        %866 = vmatpush1.bf16.xpose.msra.mxu0 0
        %867 = vmatprep.subr.bf16.mxu0 0
        %868 = vmatpush1.bf16.xpose.msra.mxu0 0
        %869 = vmatprep.subr.bf16.mxu0 0
        %870 = vmatpush1.bf16.xpose.msra.mxu0 0
        %871 = vmatprep.subr.bf16.mxu0 0
        %872 = vmatpush1.bf16.xpose.msra.mxu0 0
        %873 = vmatprep.subr.bf16.mxu0 0
        %874 = vmatpush1.bf16.xpose.msra.mxu0 0
        %875 = vmatprep.subr.bf16.mxu0 0
        %876 = vmatpush1.bf16.xpose.msra.mxu0 0
        %877 = vmatprep.subr.bf16.mxu0 0
        %878 = vmatpush1.bf16.xpose.msra.mxu0 0
        %879 = vmatprep.subr.bf16.mxu0 0
        %880 = vmatpush1.bf16.xpose.msra.mxu0 0
        %881 = vmatprep.mubr.bf16.mxu0 0
        %882 = vmatmul.mubr.bf16.gmra.mrb[0].mxu0 %v844
        %v883 = vpop.f32.mrb[0].mxu0
        %v884 = vadd.f32 0.0, %v883
        %v885 = vpop.f32.mrb[0].mxu0
        %v886 = vpop.f32.mrb[0].mxu0
        %v887 = vadd.f32 0.0, %v886
        %v888 = vpop.f32.mrb[0].mxu0
        %889 = vdwg.mxu0
        %891 = vrot.lane.b32.xlu0 %v738, 96
        %v892 = vpop.permute.xlu0 %891
        %v894 = vsel %vm742, %v738, 0
        %v897 = vsel %vm742, %v892, 0
        %899 = vmatprep.subr.bf16.mxu0 0
        %900 = vmatpush1.bf16.xpose.msra.mxu0 %v897
        %901 = vmatprep.subr.bf16.mxu0 0
        %902 = vmatpush1.bf16.xpose.msra.mxu0 0
        %903 = vmatprep.subr.bf16.mxu0 0
        %904 = vmatpush1.bf16.xpose.msra.mxu0 0
        %905 = vmatprep.subr.bf16.mxu0 0
        %906 = vmatpush1.bf16.xpose.msra.mxu0 0
        %907 = vmatprep.subr.bf16.mxu0 0
        %908 = vmatpush1.bf16.xpose.msra.mxu0 0
        %909 = vmatprep.subr.bf16.mxu0 0
        %910 = vmatpush1.bf16.xpose.msra.mxu0 0
        %911 = vmatprep.subr.bf16.mxu0 0
        %912 = vmatpush1.bf16.xpose.msra.mxu0 0
        %913 = vmatprep.subr.bf16.mxu0 0
        %914 = vmatpush1.bf16.xpose.msra.mxu0 0
        %915 = vmatprep.subr.bf16.mxu0 0
        %916 = vmatpush1.bf16.xpose.msra.mxu0 0
        %917 = vmatprep.subr.bf16.mxu0 0
        %918 = vmatpush1.bf16.xpose.msra.mxu0 0
        %919 = vmatprep.subr.bf16.mxu0 0
        %920 = vmatpush1.bf16.xpose.msra.mxu0 0
        %921 = vmatprep.subr.bf16.mxu0 0
        %922 = vmatpush1.bf16.xpose.msra.mxu0 0
        %923 = vmatprep.subr.bf16.mxu0 0
        %924 = vmatpush1.bf16.xpose.msra.mxu0 0
        %925 = vmatprep.subr.bf16.mxu0 0
        %926 = vmatpush1.bf16.xpose.msra.mxu0 0
        %927 = vmatprep.subr.bf16.mxu0 0
        %928 = vmatpush1.bf16.xpose.msra.mxu0 0
        %929 = vmatprep.subr.bf16.mxu0 0
        %930 = vmatpush1.bf16.xpose.msra.mxu0 0
        %931 = vmatprep.mubr.bf16.mxu0 0
        %932 = vmatmul.mubr.bf16.gmra.mrb[0].mxu0 %v894
        %v933 = vpop.f32.mrb[0].mxu0
        %v934 = vadd.f32 0.0, %v933
        %v935 = vpop.f32.mrb[0].mxu0
        %v936 = vpop.f32.mrb[0].mxu0
        %v937 = vadd.f32 0.0, %v936
        %v938 = vpop.f32.mrb[0].mxu0
        %939 = vdwg.mxu0
        %v940 = vmul.f32 %v784, 0.35355338
        %v941 = vmul.f32 %v787, 0.35355338
        %v942 = vmul.f32 %v834, 0.35355338
        %v943 = vmul.f32 %v837, 0.35355338
        %v944 = vmul.f32 %v884, 0.35355338
        %v945 = vmul.f32 %v887, 0.35355338
        %v946 = vmul.f32 %v934, 0.35355338
        %v947 = vmul.f32 %v937, 0.35355338
        %v948 = vld [vmem:[%s4] sm:$0xff]
        %v949 = vld [vmem:[%s4 + $0x8] sm:$0xff]
        %v950 = vadd.f32 %v940, %v948
        %v951 = vadd.f32 %v941, %v949
        %v952 = vadd.f32 %v942, %v948
        %v953 = vadd.f32 %v943, %v949
        %v954 = vadd.f32 %v944, %v948
        %v955 = vadd.f32 %v945, %v949
        %v956 = vadd.f32 %v946, %v948
        %v957 = vadd.f32 %v947, %v949
        %vm958 = vcmask 130048
        %v959 = vsel %vm958, %v950, -inf
        %960 = vmax.xlane.f32.xlu0 %v959
        %v961 = vpop.xlane.xlu0 %960
        %v962 = vsel %vm958, %v951, -inf
        %963 = vmax.xlane.f32.xlu0 %v962
        %v964 = vpop.xlane.xlu0 %963
        %v965 = vsel %vm958, %v952, -inf
        %966 = vmax.xlane.f32.xlu0 %v965
        %v967 = vpop.xlane.xlu0 %966
        %v968 = vsel %vm958, %v953, -inf
        %969 = vmax.xlane.f32.xlu0 %v968
        %v970 = vpop.xlane.xlu0 %969
        %v971 = vsel %vm958, %v954, -inf
        %972 = vmax.xlane.f32.xlu0 %v971
        %v973 = vpop.xlane.xlu0 %972
        %v974 = vsel %vm958, %v955, -inf
        %975 = vmax.xlane.f32.xlu0 %v974
        %v976 = vpop.xlane.xlu0 %975
        %v977 = vsel %vm958, %v956, -inf
        %978 = vmax.xlane.f32.xlu0 %v977
        %v979 = vpop.xlane.xlu0 %978
        %v980 = vsel %vm958, %v957, -inf
        %981 = vmax.xlane.f32.xlu0 %v980
        %v982 = vpop.xlane.xlu0 %981
        %v983 = vsub.f32 %v950, %v961
        %v984 = vsub.f32 %v951, %v964
        %v985 = vsub.f32 %v952, %v967
        %v986 = vsub.f32 %v953, %v970
        %v987 = vsub.f32 %v954, %v973
        %v988 = vsub.f32 %v955, %v976
        %v989 = vsub.f32 %v956, %v979
        %v990 = vsub.f32 %v957, %v982
        %v991 = vmul.f32 %v983, 1.442695
        %v992 = vpow.pop %v991
        %v993 = vmul.f32 %v984, 1.442695
        %v994 = vpow.pop %v993
        %v995 = vmul.f32 %v985, 1.442695
        %v996 = vpow.pop %v995
        %v997 = vmul.f32 %v986, 1.442695
        %v998 = vpow.pop %v997
        %v999 = vmul.f32 %v987, 1.442695
        %v1000 = vpow.pop %v999
        %v1001 = vmul.f32 %v988, 1.442695
        %v1002 = vpow.pop %v1001
        %v1003 = vmul.f32 %v989, 1.442695
        %v1004 = vpow.pop %v1003
        %v1005 = vmul.f32 %v990, 1.442695
        %v1006 = vpow.pop %v1005
        %v1007 = vsel %vm958, %v992, 0.0
        %1008 = vadd.xlane.f32.xlu0 %v1007
        %v1009 = vpop.xlane.xlu0 %1008
        %v1010 = vsel %vm958, %v994, 0.0
        %1011 = vadd.xlane.f32.xlu0 %v1010
        %v1012 = vpop.xlane.xlu0 %1011
        %v1013 = vsel %vm958, %v996, 0.0
        %1014 = vadd.xlane.f32.xlu0 %v1013
        %v1015 = vpop.xlane.xlu0 %1014
        %v1016 = vsel %vm958, %v998, 0.0
        %1017 = vadd.xlane.f32.xlu0 %v1016
        %v1018 = vpop.xlane.xlu0 %1017
        %v1019 = vsel %vm958, %v1000, 0.0
        %1020 = vadd.xlane.f32.xlu0 %v1019
        %v1021 = vpop.xlane.xlu0 %1020
        %v1022 = vsel %vm958, %v1002, 0.0
        %1023 = vadd.xlane.f32.xlu0 %v1022
        %v1024 = vpop.xlane.xlu0 %1023
        %v1025 = vsel %vm958, %v1004, 0.0
        %1026 = vadd.xlane.f32.xlu0 %v1025
        %v1027 = vpop.xlane.xlu0 %1026
        %v1028 = vsel %vm958, %v1006, 0.0
        %1029 = vadd.xlane.f32.xlu0 %v1028
        %v1030 = vpop.xlane.xlu0 %1029
        %v1031 = vrcp.pop %v1009
        %v1032 = vmul.f32 %v992, %v1031
        %v1033 = vrcp.pop %v1012
        %v1034 = vmul.f32 %v994, %v1033
        %v1035 = vrcp.pop %v1015
        %v1036 = vmul.f32 %v996, %v1035
        %v1037 = vrcp.pop %v1018
        %v1038 = vmul.f32 %v998, %v1037
        %v1039 = vrcp.pop %v1021
        %v1040 = vmul.f32 %v1000, %v1039
        %v1041 = vrcp.pop %v1024
        %v1042 = vmul.f32 %v1002, %v1041
        %v1043 = vrcp.pop %v1027
        %v1044 = vmul.f32 %v1004, %v1043
        %v1045 = vrcp.pop %v1030
        %v1046 = vmul.f32 %v1006, %v1045
        %v1047 = vpack.c.bf16 %v1034, %v1032
        %v1048 = vpack.c.bf16 %v1038, %v1036
        %v1049 = vpack.c.bf16 %v1042, %v1040
        %v1050 = vpack.c.bf16 %v1046, %v1044
        %1051 = vrot.lane.b32.xlu0 %v735, 64
        %v1052 = vpop.permute.xlu0 %1051
        %v1055 = vsel %vm958, %v1047, 0
        %1057 = vmatprep.subr.bf16.mxu0 0
        %1058 = vmatpush1.bf16.msra.mxu0 %v1052
        %1059 = vmatprep.subr.bf16.mxu0 0
        %1060 = vmatpush1.bf16.msra.mxu0 0
        %1061 = vmatprep.subr.bf16.mxu0 0
        %1062 = vmatpush1.bf16.msra.mxu0 0
        %1063 = vmatprep.subr.bf16.mxu0 0
        %1064 = vmatpush1.bf16.msra.mxu0 0
        %1065 = vmatprep.subr.bf16.mxu0 0
        %1066 = vmatpush1.bf16.msra.mxu0 0
        %1067 = vmatprep.subr.bf16.mxu0 0
        %1068 = vmatpush1.bf16.msra.mxu0 0
        %1069 = vmatprep.subr.bf16.mxu0 0
        %1070 = vmatpush1.bf16.msra.mxu0 0
        %1071 = vmatprep.subr.bf16.mxu0 0
        %1072 = vmatpush1.bf16.msra.mxu0 0
        %1073 = vmatprep.subr.bf16.mxu0 0
        %1074 = vmatpush1.bf16.msra.mxu0 0
        %1075 = vmatprep.subr.bf16.mxu0 0
        %1076 = vmatpush1.bf16.msra.mxu0 0
        %1077 = vmatprep.subr.bf16.mxu0 0
        %1078 = vmatpush1.bf16.msra.mxu0 0
        %1079 = vmatprep.subr.bf16.mxu0 0
        %1080 = vmatpush1.bf16.msra.mxu0 0
        %1081 = vmatprep.subr.bf16.mxu0 0
        %1082 = vmatpush1.bf16.msra.mxu0 0
        %1083 = vmatprep.subr.bf16.mxu0 0
        %1084 = vmatpush1.bf16.msra.mxu0 0
        %1085 = vmatprep.subr.bf16.mxu0 0
        %1086 = vmatpush1.bf16.msra.mxu0 0
        %1087 = vmatprep.subr.bf16.mxu0 0
        %1088 = vmatpush1.bf16.msra.mxu0 0
        %1089 = vmatprep.mubr.bf16.mxu0 0
        %1090 = vmatmul.mubr.bf16.gmra.mrb[0].mxu0 %v1055
        %v1091 = vpop.f32.mrb[0].mxu0
        %v1092 = vadd.f32 0.0, %v1091
        %v1093 = vpop.f32.mrb[0].mxu0
        %v1094 = vpop.f32.mrb[0].mxu0
        %v1095 = vadd.f32 0.0, %v1094
        %v1096 = vpop.f32.mrb[0].mxu0
        %1097 = vdwg.mxu0
        %1098 = vrot.lane.b32.xlu0 %v736, 64
        %v1099 = vpop.permute.xlu0 %1098
        %v1102 = vsel %vm958, %v1048, 0
        %1104 = vmatprep.subr.bf16.mxu0 0
        %1105 = vmatpush1.bf16.msra.mxu0 %v1099
        %1106 = vmatprep.subr.bf16.mxu0 0
        %1107 = vmatpush1.bf16.msra.mxu0 0
        %1108 = vmatprep.subr.bf16.mxu0 0
        %1109 = vmatpush1.bf16.msra.mxu0 0
        %1110 = vmatprep.subr.bf16.mxu0 0
        %1111 = vmatpush1.bf16.msra.mxu0 0
        %1112 = vmatprep.subr.bf16.mxu0 0
        %1113 = vmatpush1.bf16.msra.mxu0 0
        %1114 = vmatprep.subr.bf16.mxu0 0
        %1115 = vmatpush1.bf16.msra.mxu0 0
        %1116 = vmatprep.subr.bf16.mxu0 0
        %1117 = vmatpush1.bf16.msra.mxu0 0
        %1118 = vmatprep.subr.bf16.mxu0 0
        %1119 = vmatpush1.bf16.msra.mxu0 0
        %1120 = vmatprep.subr.bf16.mxu0 0
        %1121 = vmatpush1.bf16.msra.mxu0 0
        %1122 = vmatprep.subr.bf16.mxu0 0
        %1123 = vmatpush1.bf16.msra.mxu0 0
        %1124 = vmatprep.subr.bf16.mxu0 0
        %1125 = vmatpush1.bf16.msra.mxu0 0
        %1126 = vmatprep.subr.bf16.mxu0 0
        %1127 = vmatpush1.bf16.msra.mxu0 0
        %1128 = vmatprep.subr.bf16.mxu0 0
        %1129 = vmatpush1.bf16.msra.mxu0 0
        %1130 = vmatprep.subr.bf16.mxu0 0
        %1131 = vmatpush1.bf16.msra.mxu0 0
        %1132 = vmatprep.subr.bf16.mxu0 0
        %1133 = vmatpush1.bf16.msra.mxu0 0
        %1134 = vmatprep.subr.bf16.mxu0 0
        %1135 = vmatpush1.bf16.msra.mxu0 0
        %1136 = vmatprep.mubr.bf16.mxu0 0
        %1137 = vmatmul.mubr.bf16.gmra.mrb[0].mxu0 %v1102
        %v1138 = vpop.f32.mrb[0].mxu0
        %v1139 = vadd.f32 0.0, %v1138
        %v1140 = vpop.f32.mrb[0].mxu0
        %v1141 = vpop.f32.mrb[0].mxu0
        %v1142 = vadd.f32 0.0, %v1141
        %v1143 = vpop.f32.mrb[0].mxu0
        %1144 = vdwg.mxu0
        %1145 = vrot.lane.b32.xlu0 %v737, 64
        %v1146 = vpop.permute.xlu0 %1145
        %v1149 = vsel %vm958, %v1049, 0
        %1151 = vmatprep.subr.bf16.mxu0 0
        %1152 = vmatpush1.bf16.msra.mxu0 %v1146
        %1153 = vmatprep.subr.bf16.mxu0 0
        %1154 = vmatpush1.bf16.msra.mxu0 0
        %1155 = vmatprep.subr.bf16.mxu0 0
        %1156 = vmatpush1.bf16.msra.mxu0 0
        %1157 = vmatprep.subr.bf16.mxu0 0
        %1158 = vmatpush1.bf16.msra.mxu0 0
        %1159 = vmatprep.subr.bf16.mxu0 0
        %1160 = vmatpush1.bf16.msra.mxu0 0
        %1161 = vmatprep.subr.bf16.mxu0 0
        %1162 = vmatpush1.bf16.msra.mxu0 0
        %1163 = vmatprep.subr.bf16.mxu0 0
        %1164 = vmatpush1.bf16.msra.mxu0 0
        %1165 = vmatprep.subr.bf16.mxu0 0
        %1166 = vmatpush1.bf16.msra.mxu0 0
        %1167 = vmatprep.subr.bf16.mxu0 0
        %1168 = vmatpush1.bf16.msra.mxu0 0
        %1169 = vmatprep.subr.bf16.mxu0 0
        %1170 = vmatpush1.bf16.msra.mxu0 0
        %1171 = vmatprep.subr.bf16.mxu0 0
        %1172 = vmatpush1.bf16.msra.mxu0 0
        %1173 = vmatprep.subr.bf16.mxu0 0
        %1174 = vmatpush1.bf16.msra.mxu0 0
        %1175 = vmatprep.subr.bf16.mxu0 0
        %1176 = vmatpush1.bf16.msra.mxu0 0
        %1177 = vmatprep.subr.bf16.mxu0 0
        %1178 = vmatpush1.bf16.msra.mxu0 0
        %1179 = vmatprep.subr.bf16.mxu0 0
        %1180 = vmatpush1.bf16.msra.mxu0 0
        %1181 = vmatprep.subr.bf16.mxu0 0
        %1182 = vmatpush1.bf16.msra.mxu0 0
        %1183 = vmatprep.mubr.bf16.mxu0 0
        %1184 = vmatmul.mubr.bf16.gmra.mrb[0].mxu0 %v1149
        %v1185 = vpop.f32.mrb[0].mxu0
        %v1186 = vadd.f32 0.0, %v1185
        %v1187 = vpop.f32.mrb[0].mxu0
        %v1188 = vpop.f32.mrb[0].mxu0
        %v1189 = vadd.f32 0.0, %v1188
        %v1190 = vpop.f32.mrb[0].mxu0
        %1191 = vdwg.mxu0
        %1192 = vrot.lane.b32.xlu0 %v738, 64
        %v1193 = vpop.permute.xlu0 %1192
        %v1196 = vsel %vm958, %v1050, 0
        %1198 = vmatprep.subr.bf16.mxu0 0
        %1199 = vmatpush1.bf16.msra.mxu0 %v1193
        %1200 = vmatprep.subr.bf16.mxu0 0
        %1201 = vmatpush1.bf16.msra.mxu0 0
        %1202 = vmatprep.subr.bf16.mxu0 0
        %1203 = vmatpush1.bf16.msra.mxu0 0
        %1204 = vmatprep.subr.bf16.mxu0 0
        %1205 = vmatpush1.bf16.msra.mxu0 0
        %1206 = vmatprep.subr.bf16.mxu0 0
        %1207 = vmatpush1.bf16.msra.mxu0 0
        %1208 = vmatprep.subr.bf16.mxu0 0
        %1209 = vmatpush1.bf16.msra.mxu0 0
        %1210 = vmatprep.subr.bf16.mxu0 0
        %1211 = vmatpush1.bf16.msra.mxu0 0
        %1212 = vmatprep.subr.bf16.mxu0 0
        %1213 = vmatpush1.bf16.msra.mxu0 0
        %1214 = vmatprep.subr.bf16.mxu0 0
        %1215 = vmatpush1.bf16.msra.mxu0 0
        %1216 = vmatprep.subr.bf16.mxu0 0
        %1217 = vmatpush1.bf16.msra.mxu0 0
        %1218 = vmatprep.subr.bf16.mxu0 0
        %1219 = vmatpush1.bf16.msra.mxu0 0
        %1220 = vmatprep.subr.bf16.mxu0 0
        %1221 = vmatpush1.bf16.msra.mxu0 0
        %1222 = vmatprep.subr.bf16.mxu0 0
        %1223 = vmatpush1.bf16.msra.mxu0 0
        %1224 = vmatprep.subr.bf16.mxu0 0
        %1225 = vmatpush1.bf16.msra.mxu0 0
        %1226 = vmatprep.subr.bf16.mxu0 0
        %1227 = vmatpush1.bf16.msra.mxu0 0
        %1228 = vmatprep.subr.bf16.mxu0 0
        %1229 = vmatpush1.bf16.msra.mxu0 0
        %1230 = vmatprep.mubr.bf16.mxu0 0
        %1231 = vmatmul.mubr.bf16.gmra.mrb[0].mxu0 %v1196
        %v1232 = vpop.f32.mrb[0].mxu0
        %v1233 = vadd.f32 0.0, %v1232
        %v1234 = vpop.f32.mrb[0].mxu0
        %v1235 = vpop.f32.mrb[0].mxu0
        %v1236 = vadd.f32 0.0, %v1235
        %v1237 = vpop.f32.mrb[0].mxu0
        %1238 = vdwg.mxu0
        %1241 = vrot.lane.b32.xlu0 %v1139, 8
        %v1242 = vpop.permute.xlu0 %1241
        %1243 = vrot.lane.b32.xlu0 %v1142, 8
        %v1244 = vpop.permute.xlu0 %1243
        %1249 = vrot.lane.b32.xlu0 %v1186, 16
        %v1250 = vpop.permute.xlu0 %1249
        %1251 = vrot.lane.b32.xlu0 %v1189, 16
        %v1252 = vpop.permute.xlu0 %1251
        %1257 = vrot.lane.b32.xlu0 %v1233, 24
        %v1258 = vpop.permute.xlu0 %1257
        %1259 = vrot.lane.b32.xlu0 %v1236, 24
        %v1260 = vpop.permute.xlu0 %1259
        %v1263 = vsel %vm742, %v1092, %v1242
        %v1264 = vsel %vm742, %v1095, %v1244
        %v1265 = vsel %vm958, %v1263, %v1250
        %v1266 = vsel %vm958, %v1264, %v1252
        %vm1267 = vcmask 195584
        %v1268 = vsel %vm1267, %v1265, %v1258
        %v1269 = vsel %vm1267, %v1266, %v1260
        %v1270 = vpack.c.bf16 %v1269, %v1268
        %v1271 = vld [vmem:[%s489] sm:$0xf]
        %v1272 = vld [vmem:[%s489 + $0x4] sm:$0xf]
        %v1273 = vld [vmem:[%s489 + $0x8] sm:$0xf]
        %v1274 = vld [vmem:[%s489 + $0xc] sm:$0xf]
        %v1275 = vlaneseq
        %v1276 = vshrl.u32 %v1275, 7
        %v1277 = vsub.s32 2, %v1276
        %v1278 = vrot.slane %v607, %v1277
        %v1283 = vunpack.c.l.b16 %v1271
        %v1284 = vunpack.c.l.b16 %v1272
        %v1285 = vunpack.c.l.b16 %v1273
        %v1286 = vunpack.c.l.b16 %v1274
        %v1287 = vpack.c.b16 %v1284, %v1283
        %v1288 = vpack.c.b16 %v1286, %v1285
        %v1292 = vsel %vm610, %v1270, 0
        %1294 = vmatprep.subr.bf16.mxu0 0
        %1295 = vmatpush1.bf16.msra.mxu0 %v1287
        %1296 = vmatprep.subr.bf16.mxu0 0
        %1297 = vmatpush1.bf16.msra.mxu0 %v1288
        %1298 = vmatprep.subr.bf16.mxu0 0
        %1299 = vmatpush1.bf16.msra.mxu0 0
        %1300 = vmatprep.subr.bf16.mxu0 0
        %1301 = vmatpush1.bf16.msra.mxu0 0
        %1302 = vmatprep.subr.bf16.mxu0 0
        %1303 = vmatpush1.bf16.msra.mxu0 0
        %1304 = vmatprep.subr.bf16.mxu0 0
        %1305 = vmatpush1.bf16.msra.mxu0 0
        %1306 = vmatprep.subr.bf16.mxu0 0
        %1307 = vmatpush1.bf16.msra.mxu0 0
        %1308 = vmatprep.subr.bf16.mxu0 0
        %1309 = vmatpush1.bf16.msra.mxu0 0
        %1310 = vmatprep.subr.bf16.mxu0 0
        %1311 = vmatpush1.bf16.msra.mxu0 0
        %1312 = vmatprep.subr.bf16.mxu0 0
        %1313 = vmatpush1.bf16.msra.mxu0 0
        %1314 = vmatprep.subr.bf16.mxu0 0
        %1315 = vmatpush1.bf16.msra.mxu0 0
        %1316 = vmatprep.subr.bf16.mxu0 0
        %1317 = vmatpush1.bf16.msra.mxu0 0
        %1318 = vmatprep.subr.bf16.mxu0 0
        %1319 = vmatpush1.bf16.msra.mxu0 0
        %1320 = vmatprep.subr.bf16.mxu0 0
        %1321 = vmatpush1.bf16.msra.mxu0 0
        %1322 = vmatprep.subr.bf16.mxu0 0
        %1323 = vmatpush1.bf16.msra.mxu0 0
        %1324 = vmatprep.subr.bf16.mxu0 0
        %1325 = vmatpush1.bf16.msra.mxu0 0
        %1326 = vmatprep.mubr.bf16.mxu0 0
        %1327 = vmatmul.mubr.bf16.gmra.mrb[0].mxu0 %v1292
        %v1328 = vpop.f32.mrb[0].mxu0
        %v1329 = vadd.f32 %v1278, %v1328
        %v1330 = vpop.f32.mrb[0].mxu0
        %v1331 = vpop.f32.mrb[0].mxu0
        %v1332 = vadd.f32 %v1278, %v1331
        %v1333 = vpop.f32.mrb[0].mxu0
        %1334 = vdwg.mxu0
        %v1335 = vadd.f32 %v608, %v1329
        %v1336 = vadd.f32 %v609, %v1332
        %v1337 = vsel %vm610, %v1335, 0.0
        %1338 = vadd.xlane.f32.xlu0 %v1337
        %v1339 = vpop.xlane.xlu0 %1338
        %v1340 = vsel %vm610, %v1336, 0.0
        %1341 = vadd.xlane.f32.xlu0 %v1340
        %v1342 = vpop.xlane.xlu0 %1341
        %v1343 = vmul.f32 %v1339, %v617
        %v1344 = vmul.f32 %v1342, %v617
        %v1345 = vsub.f32 %v1335, %v1343
        %v1346 = vsub.f32 %v1336, %v1344
        %v1347 = vmul.f32 %v1345, %v1345
        %v1348 = vmul.f32 %v1346, %v1346
        %v1349 = vsel %vm610, %v1347, 0.0
        %1350 = vadd.xlane.f32.xlu0 %v1349
        %v1351 = vpop.xlane.xlu0 %1350
        %v1352 = vsel %vm610, %v1348, 0.0
        %1353 = vadd.xlane.f32.xlu0 %v1352
        %v1354 = vpop.xlane.xlu0 %1353
        %v1355 = vmul.f32 %v1351, %v617
        %v1356 = vmul.f32 %v1354, %v617
        %v1357 = vadd.f32 %v1355, 1e-05
        %v1358 = vadd.f32 %v1356, 1e-05
        %v1359 = vrsqrt.pop %v1357
        %v1360 = vrsqrt.pop %v1358
        %v1361 = vmul.f32 %v1345, %v1359
        %v1362 = vmul.f32 %v1346, %v1360
        %v1363 = vlaneseq
        %v1364 = vshrl.u32 %v1363, 7
        %v1365 = vsub.s32 3, %v1364
        %v1366 = vrot.slane %v607, %v1365
        %v1367 = vmul.f32 %v1361, %v1366
        %v1368 = vmul.f32 %v1362, %v1366
        %v1369 = vlaneseq
        %v1370 = vshrl.u32 %v1369, 7
        %v1371 = vsub.s32 4, %v1370
        %v1372 = vrot.slane %v607, %v1371
        %v1373 = vadd.f32 %v1367, %v1372
        %v1374 = vadd.f32 %v1368, %v1372
        %v1375 = vpack.c.bf16 %v1374, %v1373
        %v1376 = vld [vmem:[%s494] sm:$0xf]
        %v1377 = vld [vmem:[%s494 + $0x4] sm:$0xf]
        %v1378 = vld [vmem:[%s494 + $0x8] sm:$0xf]
        %v1379 = vld [vmem:[%s494 + $0xc] sm:$0xf]
        %v1380 = vlaneseq
        %v1381 = vshrl.u32 %v1380, 7
        %v1382 = vsub.s32 7, %v1381
        %v1383 = vrot.slane %v607, %v1382
        %v1388 = vunpack.c.l.b16 %v1376
        %v1389 = vunpack.c.l.b16 %v1377
        %v1390 = vunpack.c.l.b16 %v1378
        %v1391 = vunpack.c.l.b16 %v1379
        %v1392 = vpack.c.b16 %v1389, %v1388
        %v1393 = vpack.c.b16 %v1391, %v1390
        %v1397 = vsel %vm610, %v1375, 0
        %1399 = vmatprep.subr.bf16.mxu0 0
        %1400 = vmatpush1.bf16.msra.mxu0 %v1392
        %1401 = vmatprep.subr.bf16.mxu0 0
        %1402 = vmatpush1.bf16.msra.mxu0 %v1393
        %1403 = vmatprep.subr.bf16.mxu0 0
        %1404 = vmatpush1.bf16.msra.mxu0 0
        %1405 = vmatprep.subr.bf16.mxu0 0
        %1406 = vmatpush1.bf16.msra.mxu0 0
        %1407 = vmatprep.subr.bf16.mxu0 0
        %1408 = vmatpush1.bf16.msra.mxu0 0
        %1409 = vmatprep.subr.bf16.mxu0 0
        %1410 = vmatpush1.bf16.msra.mxu0 0
        %1411 = vmatprep.subr.bf16.mxu0 0
        %1412 = vmatpush1.bf16.msra.mxu0 0
        %1413 = vmatprep.subr.bf16.mxu0 0
        %1414 = vmatpush1.bf16.msra.mxu0 0
        %1415 = vmatprep.subr.bf16.mxu0 0
        %1416 = vmatpush1.bf16.msra.mxu0 0
        %1417 = vmatprep.subr.bf16.mxu0 0
        %1418 = vmatpush1.bf16.msra.mxu0 0
        %1419 = vmatprep.subr.bf16.mxu0 0
        %1420 = vmatpush1.bf16.msra.mxu0 0
        %1421 = vmatprep.subr.bf16.mxu0 0
        %1422 = vmatpush1.bf16.msra.mxu0 0
        %1423 = vmatprep.subr.bf16.mxu0 0
        %1424 = vmatpush1.bf16.msra.mxu0 0
        %1425 = vmatprep.subr.bf16.mxu0 0
        %1426 = vmatpush1.bf16.msra.mxu0 0
        %1427 = vmatprep.subr.bf16.mxu0 0
        %1428 = vmatpush1.bf16.msra.mxu0 0
        %1429 = vmatprep.subr.bf16.mxu0 0
        %1430 = vmatpush1.bf16.msra.mxu0 0
        %1431 = vmatprep.mubr.bf16.mxu0 0
        %1432 = vmatmul.mubr.bf16.gmra.mrb[0].mxu0 %v1397
        %v1433 = vpop.f32.mrb[0].mxu0
        %v1434 = vadd.f32 %v1383, %v1433
        %v1435 = vpop.f32.mrb[0].mxu0
        %v1436 = vpop.f32.mrb[0].mxu0
        %v1437 = vadd.f32 %v1383, %v1436
        %v1438 = vpop.f32.mrb[0].mxu0
        %1439 = vdwg.mxu0
        %v1440 = vmul.f32 %v1434, 1.702
        %v1441 = vmul.f32 %v1437, 1.702
        %v1442 = vxor.u32 %v1440, 2147483648
        %v1443 = vxor.u32 %v1441, 2147483648
        %v1444 = vmul.f32 %v1442, 1.442695
        %v1445 = vpow.pop %v1444
        %v1446 = vmul.f32 %v1443, 1.442695
        %v1447 = vpow.pop %v1446
        %v1448 = vadd.f32 %v1445, 1.0
        %v1449 = vadd.f32 %v1447, 1.0
        %v1450 = vrcp.pop %v1448
        %v1451 = vmul.f32 1.0, %v1450
        %v1452 = vrcp.pop %v1449
        %v1453 = vmul.f32 1.0, %v1452
        %v1454 = vmul.f32 %v1434, %v1451
        %v1455 = vmul.f32 %v1437, %v1453
        %v1456 = vpack.c.bf16 %v1455, %v1454
        %v1457 = vld [vmem:[%s499] sm:$0xf]
        %v1458 = vld [vmem:[%s499 + $0x4] sm:$0xf]
        %v1459 = vld [vmem:[%s499 + $0x8] sm:$0xf]
        %v1460 = vld [vmem:[%s499 + $0xc] sm:$0xf]
        %v1461 = vld [vmem:[%s499 + $0x10] sm:$0xf]
        %v1462 = vld [vmem:[%s499 + $0x14] sm:$0xf]
        %v1463 = vld [vmem:[%s499 + $0x18] sm:$0xf]
        %v1464 = vld [vmem:[%s499 + $0x1c] sm:$0xf]
        %v1465 = vld [vmem:[%s499 + $0x20] sm:$0xf]
        %v1466 = vld [vmem:[%s499 + $0x24] sm:$0xf]
        %v1467 = vld [vmem:[%s499 + $0x28] sm:$0xf]
        %v1468 = vld [vmem:[%s499 + $0x2c] sm:$0xf]
        %v1469 = vld [vmem:[%s499 + $0x30] sm:$0xf]
        %v1470 = vld [vmem:[%s499 + $0x34] sm:$0xf]
        %v1471 = vld [vmem:[%s499 + $0x38] sm:$0xf]
        %v1472 = vld [vmem:[%s499 + $0x3c] sm:$0xf]
        %v1489 = vunpack.c.l.b16 %v1457
        %v1490 = vunpack.c.l.b16 %v1458
        %v1491 = vunpack.c.l.b16 %v1459
        %v1492 = vunpack.c.l.b16 %v1460
        %v1493 = vunpack.c.l.b16 %v1461
        %v1494 = vunpack.c.l.b16 %v1462
        %v1495 = vunpack.c.l.b16 %v1463
        %v1496 = vunpack.c.l.b16 %v1464
        %v1497 = vunpack.c.l.b16 %v1465
        %v1498 = vunpack.c.l.b16 %v1466
        %v1499 = vunpack.c.l.b16 %v1467
        %v1500 = vunpack.c.l.b16 %v1468
        %v1501 = vunpack.c.l.b16 %v1469
        %v1502 = vunpack.c.l.b16 %v1470
        %v1503 = vunpack.c.l.b16 %v1471
        %v1504 = vunpack.c.l.b16 %v1472
        %v1505 = vpack.c.b16 %v1490, %v1489
        %v1506 = vpack.c.b16 %v1492, %v1491
        %v1507 = vpack.c.b16 %v1494, %v1493
        %v1508 = vpack.c.b16 %v1496, %v1495
        %v1509 = vpack.c.b16 %v1498, %v1497
        %v1510 = vpack.c.b16 %v1500, %v1499
        %v1511 = vpack.c.b16 %v1502, %v1501
        %v1512 = vpack.c.b16 %v1504, %v1503
        %1521 = vmatprep.subr.bf16.mxu0 0
        %1522 = vmatpush1.bf16.msra.mxu0 %v1505
        %1523 = vmatprep.subr.bf16.mxu0 0
        %1524 = vmatpush1.bf16.msra.mxu0 %v1506
        %1525 = vmatprep.subr.bf16.mxu0 0
        %1526 = vmatpush1.bf16.msra.mxu0 %v1507
        %1527 = vmatprep.subr.bf16.mxu0 0
        %1528 = vmatpush1.bf16.msra.mxu0 %v1508
        %1529 = vmatprep.subr.bf16.mxu0 0
        %1530 = vmatpush1.bf16.msra.mxu0 %v1509
        %1531 = vmatprep.subr.bf16.mxu0 0
        %1532 = vmatpush1.bf16.msra.mxu0 %v1510
        %1533 = vmatprep.subr.bf16.mxu0 0
        %1534 = vmatpush1.bf16.msra.mxu0 %v1511
        %1535 = vmatprep.subr.bf16.mxu0 0
        %1536 = vmatpush1.bf16.msra.mxu0 %v1512
        %1537 = vmatprep.subr.bf16.mxu0 0
        %1538 = vmatpush1.bf16.msra.mxu0 0
        %1539 = vmatprep.subr.bf16.mxu0 0
        %1540 = vmatpush1.bf16.msra.mxu0 0
        %1541 = vmatprep.subr.bf16.mxu0 0
        %1542 = vmatpush1.bf16.msra.mxu0 0
        %1543 = vmatprep.subr.bf16.mxu0 0
        %1544 = vmatpush1.bf16.msra.mxu0 0
        %1545 = vmatprep.subr.bf16.mxu0 0
        %1546 = vmatpush1.bf16.msra.mxu0 0
        %1547 = vmatprep.subr.bf16.mxu0 0
        %1548 = vmatpush1.bf16.msra.mxu0 0
        %1549 = vmatprep.subr.bf16.mxu0 0
        %1550 = vmatpush1.bf16.msra.mxu0 0
        %1551 = vmatprep.subr.bf16.mxu0 0
        %1552 = vmatpush1.bf16.msra.mxu0 0
        %1553 = vmatprep.mubr.bf16.mxu0 0
        %1554 = vmatmul.mubr.bf16.gmra.mrb[0].mxu0 %v1456
        %v1555 = vpop.f32.mrb[0].mxu0
        %v1556 = vadd.f32 0.0, %v1555
        %v1557 = vpop.f32.mrb[0].mxu0
        %v1558 = vpop.f32.mrb[0].mxu0
        %v1559 = vadd.f32 0.0, %v1558
        %v1560 = vpop.f32.mrb[0].mxu0
        %1561 = vdwg.mxu0
        %v1562 = vadd.f32 %v1335, %v1556
        %v1563 = vadd.f32 %v1336, %v1559
        %v1564 = vlaneseq
        %v1565 = vshrl.u32 %v1564, 7
        %v1566 = vsub.s32 5, %v1565
        %v1567 = vrot.slane %v607, %v1566
        %v1568 = vadd.f32 %v1562, %v1567
        %v1569 = vadd.f32 %v1563, %v1567
        %1570 = vst.msk [vmem:[#allocation2] sm:$0xff] %vm610, %v1568
        %1571 = vst.msk [vmem:[#allocation2 + $0x8] sm:$0xff] %vm610, %v1569
        %p1572 = scmp.eq.s32.totalorder %s25, 1
        // Predicated region
        $region77: #{tpu_custom_call.1} parent=71 // pred_check
          %p1573 = pneg %p1572
        $region78: #{tpu_custom_call.1} parent=71 // pred_check_branch
          %1575 = sbr.rel (%p1573) target = $region80
        $region79: #{tpu_custom_call.1} parent=71 // pred_region
          %v1576 = vld [vmem:[%s1] sm:$0x3]
          %v1577 = vlaneseq
          %v1578 = vand.u32 %v1577, 127
          %1579 = vset.pattern.permute.xlu0 0
          %1580 = vperm.xlu0 %1579, %v1576
          %v1581 = vpop.permute.xlu0 %1580
          %vm1582 = vcmp.eq.s32.totalorder %v1581, %v1578
          %v1583 = vsel %vm1582, 1.0, 0.0
          %v1585 = vsel %vm958, %v1583, 0
          %1587 = vmatprep.subr.mxu0 0.0
          %1588 = vmatpush1.msra.mxu0 %v1568
          %1589 = vmatprep.subr.mxu0 0.0
          %1590 = vmatpush1.msra.mxu0 %v1569
          %1591 = vmatprep.subr.mxu0 0.0
          %1592 = vmatpush1.msra.mxu0 0.0
          %1593 = vmatprep.subr.mxu0 0.0
          %1594 = vmatpush1.msra.mxu0 0.0
          %1595 = vmatprep.subr.mxu0 0.0
          %1596 = vmatpush1.msra.mxu0 0.0
          %1597 = vmatprep.subr.mxu0 0.0
          %1598 = vmatpush1.msra.mxu0 0.0
          %1599 = vmatprep.subr.mxu0 0.0
          %1600 = vmatpush1.msra.mxu0 0.0
          %1601 = vmatprep.subr.mxu0 0.0
          %1602 = vmatpush1.msra.mxu0 0.0
          %1603 = vmatprep.subr.mxu0 0.0
          %1604 = vmatpush1.msra.mxu0 0.0
          %1605 = vmatprep.subr.mxu0 0.0
          %1606 = vmatpush1.msra.mxu0 0.0
          %1607 = vmatprep.subr.mxu0 0.0
          %1608 = vmatpush1.msra.mxu0 0.0
          %1609 = vmatprep.subr.mxu0 0.0
          %1610 = vmatpush1.msra.mxu0 0.0
          %1611 = vmatprep.subr.mxu0 0.0
          %1612 = vmatpush1.msra.mxu0 0.0
          %1613 = vmatprep.subr.mxu0 0.0
          %1614 = vmatpush1.msra.mxu0 0.0
          %1615 = vmatprep.subr.mxu0 0.0
          %1616 = vmatpush1.msra.mxu0 0.0
          %1617 = vmatprep.subr.mxu0 0.0
          %1618 = vmatpush1.msra.mxu0 0.0
          %1619 = vmatprep.subr.mxu0 0.0
          %1620 = vmatpush1.msra.mxu0 0.0
          %1621 = vmatprep.subr.mxu0 0.0
          %1622 = vmatpush1.msra.mxu0 0.0
          %1623 = vmatprep.subr.mxu0 0.0
          %1624 = vmatpush1.msra.mxu0 0.0
          %1625 = vmatprep.subr.mxu0 0.0
          %1626 = vmatpush1.msra.mxu0 0.0
          %1627 = vmatprep.subr.mxu0 0.0
          %1628 = vmatpush1.msra.mxu0 0.0
          %1629 = vmatprep.subr.mxu0 0.0
          %1630 = vmatpush1.msra.mxu0 0.0
          %1631 = vmatprep.subr.mxu0 0.0
          %1632 = vmatpush1.msra.mxu0 0.0
          %1633 = vmatprep.subr.mxu0 0.0
          %1634 = vmatpush1.msra.mxu0 0.0
          %1635 = vmatprep.subr.mxu0 0.0
          %1636 = vmatpush1.msra.mxu0 0.0
          %1637 = vmatprep.subr.mxu0 0.0
          %1638 = vmatpush1.msra.mxu0 0.0
          %1639 = vmatprep.subr.mxu0 0.0
          %1640 = vmatpush1.msra.mxu0 0.0
          %1641 = vmatprep.subr.mxu0 0.0
          %1642 = vmatpush1.msra.mxu0 0.0
          %1643 = vmatprep.subr.mxu0 0.0
          %1644 = vmatpush1.msra.mxu0 0.0
          %1645 = vmatprep.subr.mxu0 0.0
          %1646 = vmatpush1.msra.mxu0 0.0
          %1647 = vmatprep.subr.mxu0 0.0
          %1648 = vmatpush1.msra.mxu0 0.0
          %1649 = vmatprep.subr.mxu0 0.0
          %1650 = vmatpush1.msra.mxu0 0.0
          %1651 = vmatprep.mubr.f32.mxu0 0.0
          %1652 = vmatmul.mubr.f32.gmra.mrb[0].mxu0 %v1585
          %v1653 = vpop.f32.mrb[0].mxu0
          %v1654 = vadd.f32 0.0, %v1653
          %v1655 = vpop.f32.mrb[0].mxu0
          %1656 = vdwg.mxu0
          %v1657 = vld [vmem:[%s10] sm:$0x1]
          %v1658 = vld [vmem:[%s11] sm:$0x1]
          %vm1659 = vcmask 254976
          %v1660 = vsel %vm1659, %v1654, 0.0
          %1661 = vadd.xlane.f32.xlu0 %v1660
          %v1662 = vpop.xlane.xlu0 %1661
          %v1663 = vmul.f32 %v1662, %v617
          %v1664 = vsub.f32 %v1654, %v1663
          %v1665 = vmul.f32 %v1664, %v1664
          %v1666 = vsel %vm1659, %v1665, 0.0
          %1667 = vadd.xlane.f32.xlu0 %v1666
          %v1668 = vpop.xlane.xlu0 %1667
          %v1669 = vmul.f32 %v1668, %v617
          %v1670 = vadd.f32 %v1669, 1e-05
          %v1671 = vrsqrt.pop %v1670
          %v1672 = vmul.f32 %v1664, %v1671
          %v1674 = vlaneseq
          %v1675 = vshrl.u32 %v1674, 7
          %v1676 = vsub.s32 0, %v1675
          %v1677 = vrot.slane %v1657, %v1676
          %v1679 = vmul.f32 %v1672, %v1677
          %v1681 = vlaneseq
          %v1682 = vshrl.u32 %v1681, 7
          %v1683 = vsub.s32 0, %v1682
          %v1684 = vrot.slane %v1658, %v1683
          %v1686 = vadd.f32 %v1679, %v1684
          %v1687 = vpack.c.bf16 %v1686, %v1686
          %v1688 = vld [vmem:[%s12] sm:$0xf]
          %v1689 = vld [vmem:[%s12 + $0x4] sm:$0xf]
          %v1690 = vld [vmem:[%s12 + $0x8] sm:$0xf]
          %v1691 = vld [vmem:[%s12 + $0xc] sm:$0xf]
          %v1696 = vunpack.c.l.b16 %v1688
          %v1697 = vunpack.c.l.b16 %v1689
          %v1698 = vunpack.c.l.b16 %v1690
          %v1699 = vunpack.c.l.b16 %v1691
          %v1700 = vpack.c.b16 %v1697, %v1696
          %v1701 = vpack.c.b16 %v1699, %v1698
          %v1705 = vsel %vm610, %v1687, 0
          %1707 = vmatprep.subr.bf16.mxu0 0
          %1708 = vmatpush1.bf16.msra.mxu0 %v1700
          %1709 = vmatprep.subr.bf16.mxu0 0
          %1710 = vmatpush1.bf16.msra.mxu0 %v1701
          %1711 = vmatprep.subr.bf16.mxu0 0
          %1712 = vmatpush1.bf16.msra.mxu0 0
          %1713 = vmatprep.subr.bf16.mxu0 0
          %1714 = vmatpush1.bf16.msra.mxu0 0
          %1715 = vmatprep.subr.bf16.mxu0 0
          %1716 = vmatpush1.bf16.msra.mxu0 0
          %1717 = vmatprep.subr.bf16.mxu0 0
          %1718 = vmatpush1.bf16.msra.mxu0 0
          %1719 = vmatprep.subr.bf16.mxu0 0
          %1720 = vmatpush1.bf16.msra.mxu0 0
          %1721 = vmatprep.subr.bf16.mxu0 0
          %1722 = vmatpush1.bf16.msra.mxu0 0
          %1723 = vmatprep.subr.bf16.mxu0 0
          %1724 = vmatpush1.bf16.msra.mxu0 0
          %1725 = vmatprep.subr.bf16.mxu0 0
          %1726 = vmatpush1.bf16.msra.mxu0 0
          %1727 = vmatprep.subr.bf16.mxu0 0
          %1728 = vmatpush1.bf16.msra.mxu0 0
          %1729 = vmatprep.subr.bf16.mxu0 0
          %1730 = vmatpush1.bf16.msra.mxu0 0
          %1731 = vmatprep.subr.bf16.mxu0 0
          %1732 = vmatpush1.bf16.msra.mxu0 0
          %1733 = vmatprep.subr.bf16.mxu0 0
          %1734 = vmatpush1.bf16.msra.mxu0 0
          %1735 = vmatprep.subr.bf16.mxu0 0
          %1736 = vmatpush1.bf16.msra.mxu0 0
          %1737 = vmatprep.subr.bf16.mxu0 0
          %1738 = vmatpush1.bf16.msra.mxu0 0
          %1739 = vmatprep.mubr.bf16.mxu0 0
          %1740 = vmatmul.mubr.bf16.gmra.mrb[0].mxu0 %v1705
          %v1741 = vpop.f32.mrb[0].mxu0
          %v1742 = vadd.f32 0.0, %v1741
          %v1743 = vpop.f32.mrb[0].mxu0
          %v1744 = vpop.f32.mrb[0].mxu0
          %v1745 = vpop.f32.mrb[0].mxu0
          %1746 = vdwg.mxu0
          %vm1747 = vcmask 123904
          %1748 = vst.msk [vmem:[#allocation3] sm:$0x3] %vm1747, %v1742
        $region80: #{tpu_custom_call.1} parent=71 // pred_fallthru
          _
        // Predicated region
        $region81: #{tpu_custom_call.1} parent=71 // pred_check
          %p1749 = pneg %p336
        $region82: #{tpu_custom_call.1} parent=71 // pred_check_branch
          %1751 = sbr.rel (%p1749) target = $region84
        $region83: #{tpu_custom_call.1} parent=71 // pred_region
          %s1753 = ssub.s32 32, 32
          %1754 = vsyncadd [#allocation4], %s1753
          %s1756 = sshll.u32 [#allocation3], 4
          %s1757 = int_to_ptr.vmem [resolvable:$true] %s1756
          %1759 = dma.vmem_to_hbm [thread:$0]  %s1757, 32, %s13, [#allocation4]
        $region84: #{tpu_custom_call.1} parent=71 // pred_fallthru
          _
        // Predicated region
        $region85: #{tpu_custom_call.1} parent=71 // pred_check
          %p1760 = pneg %p336
        $region86: #{tpu_custom_call.1} parent=71 // pred_check_branch
          %1762 = sbr.rel (%p1760) target = $region88
        $region87: #{tpu_custom_call.1} parent=71 // pred_region
          %1763 = dma.done [#allocation4], 32
        $region88: #{tpu_custom_call.1} parent=71 // pred_fallthru
          _
      $region72: #{tpu_custom_call.1} parent=5 // pred_fallthru
        _
      %p1764 = scmp.le.s32.totalorder 2, %s20
      // Predicated region
      $region89: #{tpu_custom_call.1} parent=5 // pred_check
        %p1765 = pneg %p1764
      $region90: #{tpu_custom_call.1} parent=5 // pred_check_branch
        %1767 = sbr.rel (%p1765) target = $region92
      $region91: #{tpu_custom_call.1} parent=5 // pred_region
        %s1768 = ssub.s32 %s20, 2
      $region92: #{tpu_custom_call.1} parent=5 // pred_fallthru
        _
    $region6: #{tpu_custom_call.1} parent=1 // loop_footer
      %s24 = sadd.s32 1, %s20
    $region7: #{tpu_custom_call.1} parent=1 // loop_footer_branch
      %19 = sbr.rel target = $region3
    $region8: #{tpu_custom_call.1} parent=1 // loop_exit
      _
    %1769 = vsyncpa [#allocation4], 1
    %s1770 = scalar_lea.sflag [#allocation4], 1
    %1771 = vsyncpa %s1770, 1

</llo_original>
